<compile_context>
chip_gen: v7x
topology: tpu7x:2x2x1
jax: 0.10.0
libtpu: 0.0.40
codegen_flags: <defaults>
</compile_context>

<pallas_src>
from functools import partial

import jax
import jax.numpy as jnp
from jax import lax
from jax.experimental import pallas as pl
from jax.experimental.pallas import tpu as pltpu


# ---------------------------------------------------------------------------
# Fused kernel: QKV projections + per-head attention + concat + output proj
# ---------------------------------------------------------------------------
def _mha_fused_kernel(x_ref, wq_ref, bq_ref, wk_ref, bk_ref, wv_ref, bv_ref,
                      wo_ref, bo_ref, mask_ref, o_ref, *rest,
                      num_heads, dqk, dv, tq, compute_dtype, return_attn):
    """One grid step = (batch b, q-tile qi)."""
    if return_attn:
        attn_ref, k_cache, v_cache = rest
    else:
        k_cache, v_cache = rest
        attn_ref = None

    cd = compute_dtype
    qi = pl.program_id(1)

    # ---- K/V projection for the full sequence, once per batch element -------
    @pl.when(qi == 0)
    def _():
        xf = x_ref[0]                                                # [S, d_model]
        k = jnp.dot(xf, wk_ref[...], preferred_element_type=jnp.float32) + bk_ref[...]
        v = jnp.dot(xf, wv_ref[...], preferred_element_type=jnp.float32) + bv_ref[...]
        k_cache[...] = k.astype(cd)                                  # [S, H*dqk]
        v_cache[...] = v.astype(cd)                                  # [S, H*dv]

    # ---- Q projection for this q tile, all heads fused (N = H*dqk) ----------
    row0 = pl.multiple_of(qi * tq, tq)
    xq = x_ref[0, pl.ds(row0, tq), :]                                # [tq, d_model]
    q = jnp.dot(xq, wq_ref[...], preferred_element_type=jnp.float32) + bq_ref[...]
    # scale q (tq*H*dqk mults) instead of logits (H*tq*S mults)
    q = (q * (1.0 / jnp.sqrt(jnp.float32(dqk)))).astype(cd)          # [tq, H*dqk]

    kf = k_cache[...]
    vf = v_cache[...]
    bias = mask_ref[0]                                               # [tq, S] f32 (already * -1e9)

    # Contract q dim 1 against k dim 1 directly (no explicit k.T / XLU transpose).
    dn = (((1,), (1,)), ((), ()))
    ctx_heads = []
    for h in range(num_heads):                                       # static unroll
        qh = q[:, h * dqk:(h + 1) * dqk]                             # [tq, dqk]
        kh = kf[:, h * dqk:(h + 1) * dqk]                            # [S,  dqk]
        vh = vf[:, h * dv:(h + 1) * dv]                              # [S,  dv]

        logits = lax.dot_general(qh, kh, dn,
                                 preferred_element_type=jnp.float32)  # [tq, S]
        logits = logits + bias                                       # additive mask (f32)
        logits = logits - jnp.max(logits, axis=-1, keepdims=True)
        e = jnp.exp(logits)
        s = jnp.sum(e, axis=-1, keepdims=True)
        # EUP approximate reciprocal + one Newton step: avoids the [tq,S] VPU divide
        # while keeping the returned attention weights ~f32-exact.
        r = pl.reciprocal(s, approx=True)
        r = r * (2.0 - s * r)
        w = e * r                                                    # [tq, S] f32

        if attn_ref is not None:
            attn_ref[0, h] = w.astype(attn_ref.dtype)
        ctx_heads.append(
            jnp.dot(w.astype(cd), vh, preferred_element_type=jnp.float32))

    # ---- fused "concat heads" + output projection ----------------------------
    concat = jnp.concatenate(ctx_heads, axis=-1).astype(cd)          # [tq, H*dv]
    out = jnp.dot(concat, wo_ref[...],
                  preferred_element_type=jnp.float32) + bo_ref[...]
    o_ref[0] = out.astype(o_ref.dtype)


# ---------------------------------------------------------------------------
# Wrapper
# ---------------------------------------------------------------------------
def _pick_q_tile(S, tq):
    if tq is not None:
        assert S % tq == 0, "q tile must divide the sequence length"
        return tq
    for cand in (512, 256, 128, 64, 32, 16, 8):
        if cand <= S and S % cand == 0:
            return cand
    return S


def multi_head_attention(x, mask, params, *, num_heads, dqk, dv,
                         compute_dtype=jnp.float32, q_tile=None,
                         return_attn=True):
    """Fused MHA forward.  Returns (output, attention_weights_or_None)."""
    B, S, d_model = x.shape
    tq = _pick_q_tile(S, q_tile)
    n_qt = S // tq
    cd = compute_dtype

    # Cast matmul operands once in the wrapper (halves DMA bytes in bf16 mode);
    # biases, mask and the entire softmax stay in f32.
    x_c = x.astype(cd)
    wq = params["wq"].astype(cd)
    wk = params["wk"].astype(cd)
    wv = params["wv"].astype(cd)
    wo = params["wo"].astype(cd)
    bq = params["bq"].reshape(1, num_heads * dqk).astype(jnp.float32)
    bk = params["bk"].reshape(1, num_heads * dqk).astype(jnp.float32)
    bv = params["bv"].reshape(1, num_heads * dv).astype(jnp.float32)
    bo = params["bo"].reshape(1, d_model).astype(jnp.float32)

    # Precompute the additive mask once; the kernel only does an f32 add.
    mask = jnp.asarray(mask, jnp.float32)
    if mask.ndim == 2:
        mask = mask[None]                                  # [1, S, S]
    mask_add = mask * jnp.float32(-1e9)                    # [Mb, S, S], Mb in {1, B}
    if mask_add.shape[0] == 1:
        mask_map = lambda b, qi: (0, qi, 0)                # batch-invariant: stays VMEM-resident
    else:
        mask_map = lambda b, qi: (b, qi, 0)

    in_specs = [
        pl.BlockSpec((1, S, d_model), lambda b, qi: (b, 0, 0)),          # x (full seq, resident per b)
        pl.BlockSpec((d_model, num_heads * dqk), lambda b, qi: (0, 0)),  # wq
        pl.BlockSpec((1, num_heads * dqk), lambda b, qi: (0, 0)),        # bq
        pl.BlockSpec((d_model, num_heads * dqk), lambda b, qi: (0, 0)),  # wk
        pl.BlockSpec((1, num_heads * dqk), lambda b, qi: (0, 0)),        # bk
        pl.BlockSpec((d_model, num_heads * dv), lambda b, qi: (0, 0)),   # wv
        pl.BlockSpec((1, num_heads * dv), lambda b, qi: (0, 0)),         # bv
        pl.BlockSpec((num_heads * dv, d_model), lambda b, qi: (0, 0)),   # wo
        pl.BlockSpec((1, d_model), lambda b, qi: (0, 0)),                # bo
        pl.BlockSpec((1, tq, S), mask_map),                              # additive mask tile
    ]
    out_specs = [pl.BlockSpec((1, tq, d_model), lambda b, qi: (b, qi, 0))]
    out_shape = [jax.ShapeDtypeStruct((B, S, d_model), jnp.float32)]
    if return_attn:
        out_specs.append(pl.BlockSpec((1, num_heads, tq, S),
                                      lambda b, qi: (b, 0, qi, 0)))
        out_shape.append(jax.ShapeDtypeStruct((B, num_heads, S, S), jnp.float32))

    kernel = partial(_mha_fused_kernel, num_heads=num_heads, dqk=dqk, dv=dv,
                     tq=tq, compute_dtype=cd, return_attn=return_attn)

    results = pl.pallas_call(
        kernel,
        grid=(B, n_qt),
        in_specs=in_specs,
        out_specs=out_specs,
        out_shape=out_shape,
        scratch_shapes=[
            pltpu.VMEM((S, num_heads * dqk), cd),   # K cache (whole sequence)
            pltpu.VMEM((S, num_heads * dv), cd),    # V cache (whole sequence)
        ],
        compiler_params=pltpu.CompilerParams(
            # batch axis parallel (feeds both v7x TensorCores); q-tile axis must be
            # "arbitrary" because the K/V scratch cache carries across it.
            dimension_semantics=("parallel", "arbitrary"),
            vmem_limit_bytes=64 * 1024 * 1024,
        ),
    )(x_c, wq, bq, wk, bk, wv, bv, wo, bo, mask_add)

    if return_attn:
        out, attn = results
        return out, attn
    return results[0], None


# ---------------------------------------------------------------------------
# Pure-JAX reference (mirrors the PyTorch forward, f32)
# ---------------------------------------------------------------------------
def ref_mha(x, mask, params, *, num_heads, dqk, dv):
    B, S, d_model = x.shape
    q = x @ params["wq"] + params["bq"]
    k = x @ params["wk"] + params["bk"]
    v = x @ params["wv"] + params["bv"]

    def split(t, d):
        return t.reshape(B, S, num_heads, d).transpose(0, 2, 1, 3)

    q, k, v = split(q, dqk), split(k, dqk), split(v, dv)
    logits = jnp.einsum("bhqd,bhkd->bhqk", q, k) / jnp.sqrt(jnp.float32(dqk))
    mask3 = jnp.broadcast_to(jnp.asarray(mask, jnp.float32).reshape((-1, S, S)),
                             (B, S, S))
    logits = logits + mask3[:, None, :, :] * (-1e9)
    w = jax.nn.softmax(logits, axis=-1)
    ctx = jnp.einsum("bhqk,bhkd->bhqd", w, v)
    concat = ctx.transpose(0, 2, 1, 3).reshape(B, S, num_heads * dv)
    return concat @ params["wo"] + params["bo"], w


if __name__ == "__main__":
    B, S, d_model, H, dqk, dv = 2, 8, 32, 4, 8, 8

    key = jax.random.PRNGKey(0)
    ks = jax.random.split(key, 10)

    def init(k, shape, fan_in):
        bound = 1.0 / jnp.sqrt(jnp.float32(fan_in))
        return jax.random.uniform(k, shape, jnp.float32, -bound, bound)

    params = dict(
        wq=init(ks[0], (d_model, H * dqk), d_model),
        bq=init(ks[1], (H * dqk,), d_model),
        wk=init(ks[2], (d_model, H * dqk), d_model),
        bk=init(ks[3], (H * dqk,), d_model),
        wv=init(ks[4], (d_model, H * dv), d_model),
        bv=init(ks[5], (H * dv,), d_model),
        wo=init(ks[6], (H * dv, d_model), H * dv),
        bo=init(ks[7], (d_model,), H * dv),
    )

    x = jax.random.normal(ks[8], (B, S, d_model), jnp.float32)
    # look-ahead (causal) mask: 1.0 where attention is disallowed.
    # Batch-invariant -> pass as [S, S]; it stays VMEM-resident across the grid.
    mask = jnp.triu(jnp.ones((S, S), jnp.float32), k=1)

    ref_out, ref_attn = ref_mha(x, mask, params, num_heads=H, dqk=dqk, dv=dv)

    # f32 compute path (faithful to the PyTorch module)
    out, attn = multi_head_attention(x, mask, params, num_heads=H, dqk=dqk, dv=dv)
    out, attn = jax.block_until_ready((out, attn))
    assert out.shape == (B, S, d_model) and attn.shape == (B, H, S, S)
    assert jnp.allclose(out, ref_out, atol=1e-3, rtol=1e-3)
    assert jnp.allclose(attn, ref_attn, atol=1e-4, rtol=1e-4)

    # path without the O(S^2) attention-weights HBM writeback
    out2, attn2 = multi_head_attention(x, mask, params, num_heads=H, dqk=dqk,
                                       dv=dv, return_attn=False)
    out2 = jax.block_until_ready(out2)
    assert attn2 is None
    assert jnp.allclose(out2, ref_out, atol=1e-3, rtol=1e-3)

    # bf16-MXU / f32-softmax fast path (v6e/v7x); looser tolerance by design
    out_bf, attn_bf = multi_head_attention(x, mask, params, num_heads=H, dqk=dqk,
                                           dv=dv, compute_dtype=jnp.bfloat16)
    out_bf, attn_bf = jax.block_until_ready((out_bf, attn_bf))
    assert jnp.allclose(out_bf, ref_out, atol=1e-1, rtol=1e-1)
    assert jnp.allclose(attn_bf, ref_attn, atol=5e-2, rtol=5e-2)

    print("KERNEL_OK")
</pallas_src>

<mosaic_0001>
module attributes {stable_mosaic.version = 11 : i64} {
  func.func @_mha_fused_kernel(%arg0: i32, %arg1: i32, %arg2: memref<1x8x32xf32, #tpu.memory_space<vmem>>, %arg3: memref<32x32xf32, #tpu.memory_space<vmem>>, %arg4: memref<1x32xf32, #tpu.memory_space<vmem>>, %arg5: memref<32x32xf32, #tpu.memory_space<vmem>>, %arg6: memref<1x32xf32, #tpu.memory_space<vmem>>, %arg7: memref<32x32xf32, #tpu.memory_space<vmem>>, %arg8: memref<1x32xf32, #tpu.memory_space<vmem>>, %arg9: memref<32x32xf32, #tpu.memory_space<vmem>>, %arg10: memref<1x32xf32, #tpu.memory_space<vmem>>, %arg11: memref<1x8x8xf32, #tpu.memory_space<vmem>>, %arg12: memref<1x8x32xf32, #tpu.memory_space<vmem>>, %arg13: memref<1x4x8x8xf32, #tpu.memory_space<vmem>>, %arg14: memref<8x32xf32, #tpu.memory_space<vmem>>, %arg15: memref<8x32xf32, #tpu.memory_space<vmem>>) attributes {dimension_semantics = [#tpu.dimension_semantics<parallel>, #tpu.dimension_semantics<arbitrary>], iteration_bounds = array<i64: 2, 1>, scalar_prefetch = 0 : i64, scratch_operands = 2 : i64, tpu.core_type = #tpu.core_type<tc>, window_params = [{transform_indices = @transform_0, window_bounds = array<i64: 1, 8, 32>}, {pipeline_mode = #tpu.pipeline_mode<synchronous>, transform_indices = @transform_1, window_bounds = array<i64: 32, 32>}, {pipeline_mode = #tpu.pipeline_mode<synchronous>, transform_indices = @transform_2, window_bounds = array<i64: 1, 32>}, {pipeline_mode = #tpu.pipeline_mode<synchronous>, transform_indices = @transform_3, window_bounds = array<i64: 32, 32>}, {pipeline_mode = #tpu.pipeline_mode<synchronous>, transform_indices = @transform_4, window_bounds = array<i64: 1, 32>}, {pipeline_mode = #tpu.pipeline_mode<synchronous>, transform_indices = @transform_5, window_bounds = array<i64: 32, 32>}, {pipeline_mode = #tpu.pipeline_mode<synchronous>, transform_indices = @transform_6, window_bounds = array<i64: 1, 32>}, {pipeline_mode = #tpu.pipeline_mode<synchronous>, transform_indices = @transform_7, window_bounds = array<i64: 32, 32>}, {pipeline_mode = #tpu.pipeline_mode<synchronous>, transform_indices = @transform_8, window_bounds = array<i64: 1, 32>}, {transform_indices = @transform_9, window_bounds = array<i64: 1, 8, 8>}, {transform_indices = @transform_10, window_bounds = array<i64: 1, 8, 32>}, {transform_indices = @transform_11, window_bounds = array<i64: 1, 4, 8, 8>}]} {
    %c0_i32 = arith.constant 0 : i32
    %0 = arith.cmpi eq, %arg1, %c0_i32 : i32
    %1 = arith.extui %0 : i1 to i32
    %c0_i32_0 = arith.constant 0 : i32
    %2 = arith.cmpi ne, %1, %c0_i32_0 : i32
    scf.if %2 {
      %c0_56 = arith.constant 0 : index
      %c0_57 = arith.constant 0 : index
      %c0_58 = arith.constant 0 : index
      %122 = vector.load %arg2[%c0_56, %c0_57, %c0_58] : memref<1x8x32xf32, #tpu.memory_space<vmem>>, vector<1x8x32xf32>
      %123 = vector.shape_cast %122 : vector<1x8x32xf32> to vector<8x32xf32>
      %c0_59 = arith.constant 0 : index
      %c0_60 = arith.constant 0 : index
      %124 = vector.load %arg5[%c0_59, %c0_60] : memref<32x32xf32, #tpu.memory_space<vmem>>, vector<32x32xf32>
      %cst_61 = arith.constant dense<0.000000e+00> : vector<8x32xf32>
      %125 = tpu.matmul %123, %124, %cst_61 {dimension_numbers = #tpu.dot_dimension_numbers<[1], [0], [0], [1], [0, 0, 1, 1], [], []>} : vector<8x32xf32>, vector<32x32xf32>, vector<8x32xf32> -> vector<8x32xf32>
      %c0_62 = arith.constant 0 : index
      %c0_63 = arith.constant 0 : index
      %126 = vector.load %arg6[%c0_62, %c0_63] : memref<1x32xf32, #tpu.memory_space<vmem>>, vector<1x32xf32>
      %127 = vector.broadcast %126 : vector<1x32xf32> to vector<8x32xf32>
      %128 = arith.addf %125, %127 : vector<8x32xf32>
      %c0_64 = arith.constant 0 : index
      %c0_65 = arith.constant 0 : index
      %129 = vector.load %arg7[%c0_64, %c0_65] : memref<32x32xf32, #tpu.memory_space<vmem>>, vector<32x32xf32>
      %cst_66 = arith.constant dense<0.000000e+00> : vector<8x32xf32>
      %130 = tpu.matmul %123, %129, %cst_66 {dimension_numbers = #tpu.dot_dimension_numbers<[1], [0], [0], [1], [0, 0, 1, 1], [], []>} : vector<8x32xf32>, vector<32x32xf32>, vector<8x32xf32> -> vector<8x32xf32>
      %c0_67 = arith.constant 0 : index
      %c0_68 = arith.constant 0 : index
      %131 = vector.load %arg8[%c0_67, %c0_68] : memref<1x32xf32, #tpu.memory_space<vmem>>, vector<1x32xf32>
      %132 = vector.broadcast %131 : vector<1x32xf32> to vector<8x32xf32>
      %133 = arith.addf %130, %132 : vector<8x32xf32>
      %c0_69 = arith.constant 0 : index
      %c0_70 = arith.constant 0 : index
      %134 = vector.load %arg14[%c0_69, %c0_70] : memref<8x32xf32, #tpu.memory_space<vmem>>, vector<8x32xf32>
      tpu.vector_store %arg14[%c0_69, %c0_70], %128 {strides = array<i32>} : memref<8x32xf32, #tpu.memory_space<vmem>>, vector<8x32xf32>,
      %c0_71 = arith.constant 0 : index
      %c0_72 = arith.constant 0 : index
      %135 = vector.load %arg15[%c0_71, %c0_72] : memref<8x32xf32, #tpu.memory_space<vmem>>, vector<8x32xf32>
      tpu.vector_store %arg15[%c0_71, %c0_72], %133 {strides = array<i32>} : memref<8x32xf32, #tpu.memory_space<vmem>>, vector<8x32xf32>,
    } else {
    }
    %c8_i32 = arith.constant 8 : i32
    %3 = arith.muli %arg1, %c8_i32 : i32
    %4 = tpu.assume_multiple %3, 8 : i32
    %c0 = arith.constant 0 : index
    %5 = arith.index_cast %4 : i32 to index
    %c0_1 = arith.constant 0 : index
    %6 = vector.load %arg2[%c0, %5, %c0_1] : memref<1x8x32xf32, #tpu.memory_space<vmem>>, vector<1x8x32xf32>
    %7 = vector.shape_cast %6 : vector<1x8x32xf32> to vector<8x32xf32>
    %c0_2 = arith.constant 0 : index
    %c0_3 = arith.constant 0 : index
    %8 = vector.load %arg3[%c0_2, %c0_3] : memref<32x32xf32, #tpu.memory_space<vmem>>, vector<32x32xf32>
    %cst = arith.constant dense<0.000000e+00> : vector<8x32xf32>
    %9 = tpu.matmul %7, %8, %cst {dimension_numbers = #tpu.dot_dimension_numbers<[1], [0], [0], [1], [0, 0, 1, 1], [], []>} : vector<8x32xf32>, vector<32x32xf32>, vector<8x32xf32> -> vector<8x32xf32>
    %c0_4 = arith.constant 0 : index
    %c0_5 = arith.constant 0 : index
    %10 = vector.load %arg4[%c0_4, %c0_5] : memref<1x32xf32, #tpu.memory_space<vmem>>, vector<1x32xf32>
    %11 = vector.broadcast %10 : vector<1x32xf32> to vector<8x32xf32>
    %12 = arith.addf %9, %11 : vector<8x32xf32>
    %cst_6 = arith.constant 8.000000e+00 : f32
    %13 = math.sqrt %cst_6 : f32
    %cst_7 = arith.constant 1.000000e+00 : f32
    %14 = arith.divf %cst_7, %13 : f32
    %15 = vector.broadcast %14 : f32 to vector<8x32xf32>
    %16 = arith.mulf %12, %15 : vector<8x32xf32>
    %c0_8 = arith.constant 0 : index
    %c0_9 = arith.constant 0 : index
    %17 = vector.load %arg14[%c0_8, %c0_9] : memref<8x32xf32, #tpu.memory_space<vmem>>, vector<8x32xf32>
    %c0_10 = arith.constant 0 : index
    %c0_11 = arith.constant 0 : index
    %18 = vector.load %arg15[%c0_10, %c0_11] : memref<8x32xf32, #tpu.memory_space<vmem>>, vector<8x32xf32>
    %c0_12 = arith.constant 0 : index
    %c0_13 = arith.constant 0 : index
    %c0_14 = arith.constant 0 : index
    %19 = vector.load %arg11[%c0_12, %c0_13, %c0_14] : memref<1x8x8xf32, #tpu.memory_space<vmem>>, vector<1x8x8xf32>
    %20 = vector.shape_cast %19 : vector<1x8x8xf32> to vector<8x8xf32>
    %21 = vector.extract_strided_slice %16 {offsets = [0, 0], sizes = [8, 8], strides = [1, 1]} : vector<8x32xf32> to vector<8x8xf32>
    %22 = vector.extract_strided_slice %17 {offsets = [0, 0], sizes = [8, 8], strides = [1, 1]} : vector<8x32xf32> to vector<8x8xf32>
    %23 = vector.extract_strided_slice %18 {offsets = [0, 0], sizes = [8, 8], strides = [1, 1]} : vector<8x32xf32> to vector<8x8xf32>
    %cst_15 = arith.constant dense<0.000000e+00> : vector<8x8xf32>
    %24 = tpu.matmul %21, %22, %cst_15 {dimension_numbers = #tpu.dot_dimension_numbers<[1], [1], [0], [0], [0, 0, 1, 0], [], []>} : vector<8x8xf32>, vector<8x8xf32>, vector<8x8xf32> -> vector<8x8xf32>
    %25 = arith.addf %24, %20 : vector<8x8xf32>
    %cst_16 = arith.constant dense<0xFF800000> : vector<8xf32>
    %26 = vector.multi_reduction <maximumf>, %25, %cst_16 [1] : vector<8x8xf32> to vector<8xf32>
    %27 = vector.shape_cast %26 : vector<8xf32> to vector<8x1xf32>
    %28 = vector.broadcast %27 : vector<8x1xf32> to vector<8x8xf32>
    %29 = arith.subf %25, %28 : vector<8x8xf32>
    %30 = math.exp %29 : vector<8x8xf32>
    %cst_17 = arith.constant dense<0.000000e+00> : vector<8xf32>
    %31 = vector.multi_reduction <add>, %30, %cst_17 [1] : vector<8x8xf32> to vector<8xf32>
    %32 = vector.shape_cast %31 : vector<8xf32> to vector<8x1xf32>
    %33 = tpu.reciprocal %32 {approx = true} : vector<8x1xf32> -> vector<8x1xf32>
    %34 = arith.mulf %32, %33 : vector<8x1xf32>
    %cst_18 = arith.constant 2.000000e+00 : f32
    %35 = vector.broadcast %cst_18 : f32 to vector<8x1xf32>
    %36 = arith.subf %35, %34 : vector<8x1xf32>
    %37 = arith.mulf %33, %36 : vector<8x1xf32>
    %38 = vector.broadcast %37 : vector<8x1xf32> to vector<8x8xf32>
    %39 = arith.mulf %30, %38 : vector<8x8xf32>
    %c0_19 = arith.constant 0 : index
    %c0_20 = arith.constant 0 : index
    %c0_21 = arith.constant 0 : index
    %c0_22 = arith.constant 0 : index
    %40 = vector.load %arg13[%c0_19, %c0_20, %c0_21, %c0_22] : memref<1x4x8x8xf32, #tpu.memory_space<vmem>>, vector<1x1x8x8xf32>
    %41 = vector.shape_cast %40 : vector<1x1x8x8xf32> to vector<8x8xf32>
    %42 = vector.shape_cast %39 : vector<8x8xf32> to vector<1x1x8x8xf32>
    tpu.vector_store %arg13[%c0_19, %c0_20, %c0_21, %c0_22], %42 {strides = array<i32>} : memref<1x4x8x8xf32, #tpu.memory_space<vmem>>, vector<1x1x8x8xf32>,
    %cst_23 = arith.constant dense<0.000000e+00> : vector<8x8xf32>
    %43 = tpu.matmul %39, %23, %cst_23 {dimension_numbers = #tpu.dot_dimension_numbers<[1], [0], [0], [1], [0, 0, 1, 1], [], []>} : vector<8x8xf32>, vector<8x8xf32>, vector<8x8xf32> -> vector<8x8xf32>
    %44 = vector.extract_strided_slice %16 {offsets = [0, 8], sizes = [8, 8], strides = [1, 1]} : vector<8x32xf32> to vector<8x8xf32>
    %45 = vector.extract_strided_slice %17 {offsets = [0, 8], sizes = [8, 8], strides = [1, 1]} : vector<8x32xf32> to vector<8x8xf32>
    %46 = vector.extract_strided_slice %18 {offsets = [0, 8], sizes = [8, 8], strides = [1, 1]} : vector<8x32xf32> to vector<8x8xf32>
    %cst_24 = arith.constant dense<0.000000e+00> : vector<8x8xf32>
    %47 = tpu.matmul %44, %45, %cst_24 {dimension_numbers = #tpu.dot_dimension_numbers<[1], [1], [0], [0], [0, 0, 1, 0], [], []>} : vector<8x8xf32>, vector<8x8xf32>, vector<8x8xf32> -> vector<8x8xf32>
    %48 = arith.addf %47, %20 : vector<8x8xf32>
    %cst_25 = arith.constant dense<0xFF800000> : vector<8xf32>
    %49 = vector.multi_reduction <maximumf>, %48, %cst_25 [1] : vector<8x8xf32> to vector<8xf32>
    %50 = vector.shape_cast %49 : vector<8xf32> to vector<8x1xf32>
    %51 = vector.broadcast %50 : vector<8x1xf32> to vector<8x8xf32>
    %52 = arith.subf %48, %51 : vector<8x8xf32>
    %53 = math.exp %52 : vector<8x8xf32>
    %cst_26 = arith.constant dense<0.000000e+00> : vector<8xf32>
    %54 = vector.multi_reduction <add>, %53, %cst_26 [1] : vector<8x8xf32> to vector<8xf32>
    %55 = vector.shape_cast %54 : vector<8xf32> to vector<8x1xf32>
    %56 = tpu.reciprocal %55 {approx = true} : vector<8x1xf32> -> vector<8x1xf32>
    %57 = arith.mulf %55, %56 : vector<8x1xf32>
    %cst_27 = arith.constant 2.000000e+00 : f32
    %58 = vector.broadcast %cst_27 : f32 to vector<8x1xf32>
    %59 = arith.subf %58, %57 : vector<8x1xf32>
    %60 = arith.mulf %56, %59 : vector<8x1xf32>
    %61 = vector.broadcast %60 : vector<8x1xf32> to vector<8x8xf32>
    %62 = arith.mulf %53, %61 : vector<8x8xf32>
    %c0_28 = arith.constant 0 : index
    %c1 = arith.constant 1 : index
    %c0_29 = arith.constant 0 : index
    %c0_30 = arith.constant 0 : index
    %63 = vector.load %arg13[%c0_28, %c1, %c0_29, %c0_30] : memref<1x4x8x8xf32, #tpu.memory_space<vmem>>, vector<1x1x8x8xf32>
    %64 = vector.shape_cast %63 : vector<1x1x8x8xf32> to vector<8x8xf32>
    %65 = vector.shape_cast %62 : vector<8x8xf32> to vector<1x1x8x8xf32>
    tpu.vector_store %arg13[%c0_28, %c1, %c0_29, %c0_30], %65 {strides = array<i32>} : memref<1x4x8x8xf32, #tpu.memory_space<vmem>>, vector<1x1x8x8xf32>,
    %cst_31 = arith.constant dense<0.000000e+00> : vector<8x8xf32>
    %66 = tpu.matmul %62, %46, %cst_31 {dimension_numbers = #tpu.dot_dimension_numbers<[1], [0], [0], [1], [0, 0, 1, 1], [], []>} : vector<8x8xf32>, vector<8x8xf32>, vector<8x8xf32> -> vector<8x8xf32>
    %67 = vector.extract_strided_slice %16 {offsets = [0, 16], sizes = [8, 8], strides = [1, 1]} : vector<8x32xf32> to vector<8x8xf32>
    %68 = vector.extract_strided_slice %17 {offsets = [0, 16], sizes = [8, 8], strides = [1, 1]} : vector<8x32xf32> to vector<8x8xf32>
    %69 = vector.extract_strided_slice %18 {offsets = [0, 16], sizes = [8, 8], strides = [1, 1]} : vector<8x32xf32> to vector<8x8xf32>
    %cst_32 = arith.constant dense<0.000000e+00> : vector<8x8xf32>
    %70 = tpu.matmul %67, %68, %cst_32 {dimension_numbers = #tpu.dot_dimension_numbers<[1], [1], [0], [0], [0, 0, 1, 0], [], []>} : vector<8x8xf32>, vector<8x8xf32>, vector<8x8xf32> -> vector<8x8xf32>
    %71 = arith.addf %70, %20 : vector<8x8xf32>
    %cst_33 = arith.constant dense<0xFF800000> : vector<8xf32>
    %72 = vector.multi_reduction <maximumf>, %71, %cst_33 [1] : vector<8x8xf32> to vector<8xf32>
    %73 = vector.shape_cast %72 : vector<8xf32> to vector<8x1xf32>
    %74 = vector.broadcast %73 : vector<8x1xf32> to vector<8x8xf32>
    %75 = arith.subf %71, %74 : vector<8x8xf32>
    %76 = math.exp %75 : vector<8x8xf32>
    %cst_34 = arith.constant dense<0.000000e+00> : vector<8xf32>
    %77 = vector.multi_reduction <add>, %76, %cst_34 [1] : vector<8x8xf32> to vector<8xf32>
    %78 = vector.shape_cast %77 : vector<8xf32> to vector<8x1xf32>
    %79 = tpu.reciprocal %78 {approx = true} : vector<8x1xf32> -> vector<8x1xf32>
    %80 = arith.mulf %78, %79 : vector<8x1xf32>
    %cst_35 = arith.constant 2.000000e+00 : f32
    %81 = vector.broadcast %cst_35 : f32 to vector<8x1xf32>
    %82 = arith.subf %81, %80 : vector<8x1xf32>
    %83 = arith.mulf %79, %82 : vector<8x1xf32>
    %84 = vector.broadcast %83 : vector<8x1xf32> to vector<8x8xf32>
    %85 = arith.mulf %76, %84 : vector<8x8xf32>
    %c0_36 = arith.constant 0 : index
    %c2 = arith.constant 2 : index
    %c0_37 = arith.constant 0 : index
    %c0_38 = arith.constant 0 : index
    %86 = vector.load %arg13[%c0_36, %c2, %c0_37, %c0_38] : memref<1x4x8x8xf32, #tpu.memory_space<vmem>>, vector<1x1x8x8xf32>
    %87 = vector.shape_cast %86 : vector<1x1x8x8xf32> to vector<8x8xf32>
    %88 = vector.shape_cast %85 : vector<8x8xf32> to vector<1x1x8x8xf32>
    tpu.vector_store %arg13[%c0_36, %c2, %c0_37, %c0_38], %88 {strides = array<i32>} : memref<1x4x8x8xf32, #tpu.memory_space<vmem>>, vector<1x1x8x8xf32>,
    %cst_39 = arith.constant dense<0.000000e+00> : vector<8x8xf32>
    %89 = tpu.matmul %85, %69, %cst_39 {dimension_numbers = #tpu.dot_dimension_numbers<[1], [0], [0], [1], [0, 0, 1, 1], [], []>} : vector<8x8xf32>, vector<8x8xf32>, vector<8x8xf32> -> vector<8x8xf32>
    %90 = vector.extract_strided_slice %16 {offsets = [0, 24], sizes = [8, 8], strides = [1, 1]} : vector<8x32xf32> to vector<8x8xf32>
    %91 = vector.extract_strided_slice %17 {offsets = [0, 24], sizes = [8, 8], strides = [1, 1]} : vector<8x32xf32> to vector<8x8xf32>
    %92 = vector.extract_strided_slice %18 {offsets = [0, 24], sizes = [8, 8], strides = [1, 1]} : vector<8x32xf32> to vector<8x8xf32>
    %cst_40 = arith.constant dense<0.000000e+00> : vector<8x8xf32>
    %93 = tpu.matmul %90, %91, %cst_40 {dimension_numbers = #tpu.dot_dimension_numbers<[1], [1], [0], [0], [0, 0, 1, 0], [], []>} : vector<8x8xf32>, vector<8x8xf32>, vector<8x8xf32> -> vector<8x8xf32>
    %94 = arith.addf %93, %20 : vector<8x8xf32>
    %cst_41 = arith.constant dense<0xFF800000> : vector<8xf32>
    %95 = vector.multi_reduction <maximumf>, %94, %cst_41 [1] : vector<8x8xf32> to vector<8xf32>
    %96 = vector.shape_cast %95 : vector<8xf32> to vector<8x1xf32>
    %97 = vector.broadcast %96 : vector<8x1xf32> to vector<8x8xf32>
    %98 = arith.subf %94, %97 : vector<8x8xf32>
    %99 = math.exp %98 : vector<8x8xf32>
    %cst_42 = arith.constant dense<0.000000e+00> : vector<8xf32>
    %100 = vector.multi_reduction <add>, %99, %cst_42 [1] : vector<8x8xf32> to vector<8xf32>
    %101 = vector.shape_cast %100 : vector<8xf32> to vector<8x1xf32>
    %102 = tpu.reciprocal %101 {approx = true} : vector<8x1xf32> -> vector<8x1xf32>
    %103 = arith.mulf %101, %102 : vector<8x1xf32>
    %cst_43 = arith.constant 2.000000e+00 : f32
    %104 = vector.broadcast %cst_43 : f32 to vector<8x1xf32>
    %105 = arith.subf %104, %103 : vector<8x1xf32>
    %106 = arith.mulf %102, %105 : vector<8x1xf32>
    %107 = vector.broadcast %106 : vector<8x1xf32> to vector<8x8xf32>
    %108 = arith.mulf %99, %107 : vector<8x8xf32>
    %c0_44 = arith.constant 0 : index
    %c3 = arith.constant 3 : index
    %c0_45 = arith.constant 0 : index
    %c0_46 = arith.constant 0 : index
    %109 = vector.load %arg13[%c0_44, %c3, %c0_45, %c0_46] : memref<1x4x8x8xf32, #tpu.memory_space<vmem>>, vector<1x1x8x8xf32>
    %110 = vector.shape_cast %109 : vector<1x1x8x8xf32> to vector<8x8xf32>
    %111 = vector.shape_cast %108 : vector<8x8xf32> to vector<1x1x8x8xf32>
    tpu.vector_store %arg13[%c0_44, %c3, %c0_45, %c0_46], %111 {strides = array<i32>} : memref<1x4x8x8xf32, #tpu.memory_space<vmem>>, vector<1x1x8x8xf32>,
    %cst_47 = arith.constant dense<0.000000e+00> : vector<8x8xf32>
    %112 = tpu.matmul %108, %92, %cst_47 {dimension_numbers = #tpu.dot_dimension_numbers<[1], [0], [0], [1], [0, 0, 1, 1], [], []>} : vector<8x8xf32>, vector<8x8xf32>, vector<8x8xf32> -> vector<8x8xf32>
    %113 = tpu.concatenate %43, %66, %89, %112 in 1 : vector<8x8xf32>, vector<8x8xf32>, vector<8x8xf32>, vector<8x8xf32> -> vector<8x32xf32>
    %c0_48 = arith.constant 0 : index
    %c0_49 = arith.constant 0 : index
    %114 = vector.load %arg9[%c0_48, %c0_49] : memref<32x32xf32, #tpu.memory_space<vmem>>, vector<32x32xf32>
    %cst_50 = arith.constant dense<0.000000e+00> : vector<8x32xf32>
    %115 = tpu.matmul %113, %114, %cst_50 {dimension_numbers = #tpu.dot_dimension_numbers<[1], [0], [0], [1], [0, 0, 1, 1], [], []>} : vector<8x32xf32>, vector<32x32xf32>, vector<8x32xf32> -> vector<8x32xf32>
    %c0_51 = arith.constant 0 : index
    %c0_52 = arith.constant 0 : index
    %116 = vector.load %arg10[%c0_51, %c0_52] : memref<1x32xf32, #tpu.memory_space<vmem>>, vector<1x32xf32>
    %117 = vector.broadcast %116 : vector<1x32xf32> to vector<8x32xf32>
    %118 = arith.addf %115, %117 : vector<8x32xf32>
    %c0_53 = arith.constant 0 : index
    %c0_54 = arith.constant 0 : index
    %c0_55 = arith.constant 0 : index
    %119 = vector.load %arg12[%c0_53, %c0_54, %c0_55] : memref<1x8x32xf32, #tpu.memory_space<vmem>>, vector<1x8x32xf32>
    %120 = vector.shape_cast %119 : vector<1x8x32xf32> to vector<8x32xf32>
    %121 = vector.shape_cast %118 : vector<8x32xf32> to vector<1x8x32xf32>
    tpu.vector_store %arg12[%c0_53, %c0_54, %c0_55], %121 {strides = array<i32>} : memref<1x8x32xf32, #tpu.memory_space<vmem>>, vector<1x8x32xf32>,
    return
  }
  func.func @transform_0(%arg0: i32, %arg1: i32) -> (i32, i32, i32) {
    %c0_i32 = arith.constant 0 : i32
    %c0_i32_0 = arith.constant 0 : i32
    %c0_i32_1 = arith.constant 0 : i32
    return %arg0, %c0_i32, %c0_i32_0 : i32, i32, i32
  }
  func.func @transform_1(%arg0: i32, %arg1: i32) -> (i32, i32) {
    %c0_i32 = arith.constant 0 : i32
    %c0_i32_0 = arith.constant 0 : i32
    %c0_i32_1 = arith.constant 0 : i32
    return %c0_i32, %c0_i32_0 : i32, i32
  }
  func.func @transform_2(%arg0: i32, %arg1: i32) -> (i32, i32) {
    %c0_i32 = arith.constant 0 : i32
    %c0_i32_0 = arith.constant 0 : i32
    %c0_i32_1 = arith.constant 0 : i32
    return %c0_i32, %c0_i32_0 : i32, i32
  }
  func.func @transform_3(%arg0: i32, %arg1: i32) -> (i32, i32) {
    %c0_i32 = arith.constant 0 : i32
    %c0_i32_0 = arith.constant 0 : i32
    %c0_i32_1 = arith.constant 0 : i32
    return %c0_i32, %c0_i32_0 : i32, i32
  }
  func.func @transform_4(%arg0: i32, %arg1: i32) -> (i32, i32) {
    %c0_i32 = arith.constant 0 : i32
    %c0_i32_0 = arith.constant 0 : i32
    %c0_i32_1 = arith.constant 0 : i32
    return %c0_i32, %c0_i32_0 : i32, i32
  }
  func.func @transform_5(%arg0: i32, %arg1: i32) -> (i32, i32) {
    %c0_i32 = arith.constant 0 : i32
    %c0_i32_0 = arith.constant 0 : i32
    %c0_i32_1 = arith.constant 0 : i32
    return %c0_i32, %c0_i32_0 : i32, i32
  }
  func.func @transform_6(%arg0: i32, %arg1: i32) -> (i32, i32) {
    %c0_i32 = arith.constant 0 : i32
    %c0_i32_0 = arith.constant 0 : i32
    %c0_i32_1 = arith.constant 0 : i32
    return %c0_i32, %c0_i32_0 : i32, i32
  }
  func.func @transform_7(%arg0: i32, %arg1: i32) -> (i32, i32) {
    %c0_i32 = arith.constant 0 : i32
    %c0_i32_0 = arith.constant 0 : i32
    %c0_i32_1 = arith.constant 0 : i32
    return %c0_i32, %c0_i32_0 : i32, i32
  }
  func.func @transform_8(%arg0: i32, %arg1: i32) -> (i32, i32) {
    %c0_i32 = arith.constant 0 : i32
    %c0_i32_0 = arith.constant 0 : i32
    %c0_i32_1 = arith.constant 0 : i32
    return %c0_i32, %c0_i32_0 : i32, i32
  }
  func.func @transform_9(%arg0: i32, %arg1: i32) -> (i32, i32, i32) {
    %c0_i32 = arith.constant 0 : i32
    %c0_i32_0 = arith.constant 0 : i32
    %c0_i32_1 = arith.constant 0 : i32
    return %c0_i32, %arg1, %c0_i32_0 : i32, i32, i32
  }
  func.func @transform_10(%arg0: i32, %arg1: i32) -> (i32, i32, i32) {
    %c0_i32 = arith.constant 0 : i32
    %c0_i32_0 = arith.constant 0 : i32
    return %arg0, %arg1, %c0_i32 : i32, i32, i32
  }
  func.func @transform_11(%arg0: i32, %arg1: i32) -> (i32, i32, i32, i32) {
    %c0_i32 = arith.constant 0 : i32
    %c0_i32_0 = arith.constant 0 : i32
    %c0_i32_1 = arith.constant 0 : i32
    return %arg0, %c0_i32, %arg1, %c0_i32_0 : i32, i32, i32, i32
  }
}

</mosaic_0001>

<llo_original>
// kernel: tpu_custom_call.1
$region0: #{tpu_custom_call.1}
  #allocation0 [shape = 'u32[]', space=smem, size = 0x4, offset = 0x4, fixed_abs, tag = 'smem constant byte address 0x4 - core index']
  #allocation1 [shape = 'u32[144,128]{1,0:T(1,128)}', space=vmem, size = 0x12000, scoped, tag = 'internal scratch']
  #allocation2 [shape = 'f32[8,32]{1,0:T(8,128)}', space=vmem, size = 0x1000, scoped, tag = 'scratch operand']
  #allocation3 [shape = 'f32[8,32]{1,0:T(8,128)}', space=vmem, size = 0x1000, scoped, tag = 'scratch operand']
  %s0 = inlined_call_operand.hbm [shape: f32[2,8,32], index: 0, kind: input, shape index: {}]
  %s1 = inlined_call_operand.hbm [shape: f32[32,32], index: 1, kind: input, shape index: {}]
  %s2 = inlined_call_operand.hbm [shape: f32[1,32], index: 2, kind: input, shape index: {}]
  %s3 = inlined_call_operand.hbm [shape: f32[32,32], index: 3, kind: input, shape index: {}]
  %s4 = inlined_call_operand.hbm [shape: f32[1,32], index: 4, kind: input, shape index: {}]
  %s5 = inlined_call_operand.hbm [shape: f32[32,32], index: 5, kind: input, shape index: {}]
  %s6 = inlined_call_operand.hbm [shape: f32[1,32], index: 6, kind: input, shape index: {}]
  %s7 = inlined_call_operand.hbm [shape: f32[32,32], index: 7, kind: input, shape index: {}]
  %s8 = inlined_call_operand.hbm [shape: f32[1,32], index: 8, kind: input, shape index: {}]
  %s9 = inlined_call_operand.hbm [shape: f32[1,8,8], index: 9, kind: input, shape index: {}]
  %s10 = inlined_call_operand.hbm [shape: f32[2,8,32], index: 10, kind: output, shape index: {0}]
  %s11 = inlined_call_operand.hbm [shape: f32[2,4,8,8], index: 11, kind: output, shape index: {1}]
  %12 = xla_tuple %s10, %s11
  %s13 = sld [smem:[#allocation0]]
  $region125: #{tpu_custom_call.1} parent=0
    _
  %s15 = ssub.s32 1, %s13
  %s16 = scalar_select 0, %s15, %s13
  $region1: #{tpu_custom_call.1} parent=0
    #allocation4 [shape = 'u8[8192]{0}', space=vmem, size = 0x2000, scoped, tag = 'input window, operand 0']
    #allocation5 [shape = 's32[2]{0}', space=sflag, size = 0x8, scoped, tag = 'scoped memory for tpu_custom_call.1']
    #allocation6 [shape = 's32[2]{0}', space=sflag, size = 0x8, scoped, tag = 'scoped memory for tpu_custom_call.1']
    #allocation7 [shape = 'u8[16384]{0}', space=vmem, size = 0x4000, scoped, tag = 'input window, operand 1, single buffered']
    #allocation8 [shape = 's32[1]{0}', space=sflag, size = 0x4, scoped, tag = 'scoped memory for tpu_custom_call.1']
    #allocation9 [shape = 'u8[512]{0}', space=vmem, size = 0x400, scoped, tag = 'input window, operand 2, single buffered']
    #allocation10 [shape = 'u8[16384]{0}', space=vmem, size = 0x4000, scoped, tag = 'input window, operand 3, single buffered']
    #allocation11 [shape = 's32[1]{0}', space=sflag, size = 0x4, scoped, tag = 'scoped memory for tpu_custom_call.1']
    #allocation12 [shape = 'u8[512]{0}', space=vmem, size = 0x400, scoped, tag = 'input window, operand 4, single buffered']
    #allocation13 [shape = 'u8[16384]{0}', space=vmem, size = 0x4000, scoped, tag = 'input window, operand 5, single buffered']
    #allocation14 [shape = 's32[1]{0}', space=sflag, size = 0x4, scoped, tag = 'scoped memory for tpu_custom_call.1']
    #allocation15 [shape = 'u8[512]{0}', space=vmem, size = 0x400, scoped, tag = 'input window, operand 6, single buffered']
    #allocation16 [shape = 'u8[16384]{0}', space=vmem, size = 0x4000, scoped, tag = 'input window, operand 7, single buffered']
    #allocation17 [shape = 's32[1]{0}', space=sflag, size = 0x4, scoped, tag = 'scoped memory for tpu_custom_call.1']
    #allocation18 [shape = 'u8[512]{0}', space=vmem, size = 0x400, scoped, tag = 'input window, operand 8, single buffered']
    #allocation19 [shape = 'u8[4096]{0}', space=vmem, size = 0x1000, scoped, tag = 'input window, operand 9, single buffered']
    #allocation20 [shape = 's32[1]{0}', space=sflag, size = 0x4, scoped, tag = 'scoped memory for tpu_custom_call.1']
    #allocation21 [shape = 'u8[8192]{0}', space=vmem, size = 0x2000, scoped, tag = 'output window, operand 0']
    #allocation22 [shape = 'u8[32768]{0}', space=vmem, size = 0x8000, scoped, tag = 'output window, operand 1']
    #allocation23 [shape = 's32[2]{0}', space=sflag, size = 0x8, scoped, tag = 'scoped memory for tpu_custom_call.1']
    %17 = vsyncpa [#allocation5], 0
    %s18 = scalar_lea.sflag [#allocation5], 1
    %19 = vsyncpa %s18, 0
    %20 = vsyncpa [#allocation8], 0
    %21 = vsyncpa [#allocation11], 0
    %22 = vsyncpa [#allocation14], 0
    %23 = vsyncpa [#allocation17], 0
    %24 = vsyncpa [#allocation20], 0
    %25 = vsyncpa [#allocation6], 0
    %s26 = scalar_lea.sflag [#allocation6], 1
    %27 = vsyncpa %s26, 0
    %28 = vsyncpa [#allocation23], 0
    %s29 = scalar_lea.sflag [#allocation23], 1
    %30 = vsyncpa %s29, 0
    loop: start=0, step=1, limit=4
    $region2: #{tpu_custom_call.1} parent=1 // loop_pre_header
      _
    $region3: #{tpu_custom_call.1} parent=1 // loop_header
      %s32 = sphi 0, %s36
      %p33 = scmp.ge.s32.totalorder %s32, 4
      %s39 = sphi 0, %s51
      %s40 = sphi 0, %s47
      %s41 = sphi 0, %s39
      %s42 = sphi 0, %s40
      %s43 = sphi 0, %s41
      %s44 = sphi 0, %s42
      %s54 = sphi 0, %s56
      %s57 = sphi 0, %s54
      %s58 = sphi 0, %s57
      %s74 = sphi 0, %s58
      %s78 = sphi 0, %s78
      %s80 = sphi 0, %s78
      %s81 = sphi 0, %s80
      %s95 = sphi 0, %s81
      %s99 = sphi 0, %s99
      %s101 = sphi 0, %s99
      %s102 = sphi 0, %s101
      %s116 = sphi 0, %s102
      %s120 = sphi 0, %s120
      %s122 = sphi 0, %s120
      %s123 = sphi 0, %s122
      %s137 = sphi 0, %s123
      %s141 = sphi 0, %s141
      %s143 = sphi 0, %s141
      %s144 = sphi 0, %s143
      %s158 = sphi 0, %s144
      %s162 = sphi 0, %s162
      %s164 = sphi 0, %s162
      %s165 = sphi 0, %s164
      %s179 = sphi 0, %s165
      %s183 = sphi 0, %s183
      %s185 = sphi 0, %s183
      %s186 = sphi 0, %s185
      %s200 = sphi 0, %s186
      %s204 = sphi 0, %s204
      %s206 = sphi 0, %s204
      %s207 = sphi 0, %s206
      %s221 = sphi 0, %s207
      %s225 = sphi 0, %s225
      %s227 = sphi 0, %s225
      %s228 = sphi 0, %s227
      %s242 = sphi 0, %s228
      %s248 = sphi 0, %s250
      %s251 = sphi 0, %s248
      %s252 = sphi 0, %s251
      %s268 = sphi 0, %s252
      %s276 = sphi 0, %s278
      %s279 = sphi 0, %s276
      %s280 = sphi 0, %s279
      %s296 = sphi 0, %s280
      %s304 = sphi 0, %s306
      %s307 = sphi 0, %s304
      %s308 = sphi 0, %s307
      %s324 = sphi 0, %s308
    $region4: #{tpu_custom_call.1} parent=1 // loop_header_branch
      %35 = sbr.rel (%p33) target = $region8
    $region5: #{tpu_custom_call.1} parent=1 // loop_body
      %s37 = ssub.s32 %s32, 1
      %s38 = ssub.s32 %s32, 2
      %s45 = sadd.s32 1, %s40
      %p46 = scmp.ge.s32.totalorder %s45, 1
      %s47 = scalar_select %p46, 0, %s45
      %s48 = sadd.s32 1, %s39
      %s49 = scalar_select %p46, %s48, %s39
      %p50 = scmp.ge.s32.totalorder %s49, 2
      %s51 = scalar_select %p50, 0, %s49
      %s52 = ssub.s32 %s39, %s51
      %p53 = scmp.eq.s32.totalorder %s52, 0
      %s55 = sadd.s32 %s54, 1
      %s56 = scalar_select %p53, %s54, %s55
      %p59 = pneg %p53
      %p60 = scmp.eq.s32.totalorder %s32, 1
      %p61 = por %p59, %p60
      %p62 = scmp.ne.s32.totalorder %s54, %s57
      %p63 = scmp.eq.s32.totalorder %s32, 0
      %p64 = por %p62, %p63
      %p65 = scmp.ne.s32.totalorder %s54, %s57
      %p66 = scmp.eq.s32.totalorder %s37, 1
      %p67 = por %p65, %p66
      %p68 = scmp.ne.s32.totalorder %s57, %s58
      %p69 = scmp.eq.s32.totalorder %s37, 0
      %p70 = por %p68, %p69
      %p71 = scmp.ne.s32.totalorder %s57, %s58
      %p72 = scmp.eq.s32.totalorder %s38, 1
      %p73 = por %p71, %p72
      %p75 = scmp.ne.s32.totalorder %s58, %s74
      %p76 = scmp.eq.s32.totalorder %s38, 0
      %p77 = por %p75, %p76
      %s79 = sadd.s32 %s78, 1
      %p82 = scmp.eq.s32.totalorder %s32, 1
      %p83 = scmp.ne.s32.totalorder %s78, %s80
      %p84 = scmp.eq.s32.totalorder %s32, 0
      %p85 = por %p83, %p84
      %p86 = scmp.ne.s32.totalorder %s78, %s80
      %p87 = scmp.eq.s32.totalorder %s37, 1
      %p88 = por %p86, %p87
      %p89 = scmp.ne.s32.totalorder %s80, %s81
      %p90 = scmp.eq.s32.totalorder %s37, 0
      %p91 = por %p89, %p90
      %p92 = scmp.ne.s32.totalorder %s80, %s81
      %p93 = scmp.eq.s32.totalorder %s38, 1
      %p94 = por %p92, %p93
      %p96 = scmp.ne.s32.totalorder %s81, %s95
      %p97 = scmp.eq.s32.totalorder %s38, 0
      %p98 = por %p96, %p97
      %s100 = sadd.s32 %s99, 1
      %p103 = scmp.eq.s32.totalorder %s32, 1
      %p104 = scmp.ne.s32.totalorder %s99, %s101
      %p105 = scmp.eq.s32.totalorder %s32, 0
      %p106 = por %p104, %p105
      %p107 = scmp.ne.s32.totalorder %s99, %s101
      %p108 = scmp.eq.s32.totalorder %s37, 1
      %p109 = por %p107, %p108
      %p110 = scmp.ne.s32.totalorder %s101, %s102
      %p111 = scmp.eq.s32.totalorder %s37, 0
      %p112 = por %p110, %p111
      %p113 = scmp.ne.s32.totalorder %s101, %s102
      %p114 = scmp.eq.s32.totalorder %s38, 1
      %p115 = por %p113, %p114
      %p117 = scmp.ne.s32.totalorder %s102, %s116
      %p118 = scmp.eq.s32.totalorder %s38, 0
      %p119 = por %p117, %p118
      %s121 = sadd.s32 %s120, 1
      %p124 = scmp.eq.s32.totalorder %s32, 1
      %p125 = scmp.ne.s32.totalorder %s120, %s122
      %p126 = scmp.eq.s32.totalorder %s32, 0
      %p127 = por %p125, %p126
      %p128 = scmp.ne.s32.totalorder %s120, %s122
      %p129 = scmp.eq.s32.totalorder %s37, 1
      %p130 = por %p128, %p129
      %p131 = scmp.ne.s32.totalorder %s122, %s123
      %p132 = scmp.eq.s32.totalorder %s37, 0
      %p133 = por %p131, %p132
      %p134 = scmp.ne.s32.totalorder %s122, %s123
      %p135 = scmp.eq.s32.totalorder %s38, 1
      %p136 = por %p134, %p135
      %p138 = scmp.ne.s32.totalorder %s123, %s137
      %p139 = scmp.eq.s32.totalorder %s38, 0
      %p140 = por %p138, %p139
      %s142 = sadd.s32 %s141, 1
      %p145 = scmp.eq.s32.totalorder %s32, 1
      %p146 = scmp.ne.s32.totalorder %s141, %s143
      %p147 = scmp.eq.s32.totalorder %s32, 0
      %p148 = por %p146, %p147
      %p149 = scmp.ne.s32.totalorder %s141, %s143
      %p150 = scmp.eq.s32.totalorder %s37, 1
      %p151 = por %p149, %p150
      %p152 = scmp.ne.s32.totalorder %s143, %s144
      %p153 = scmp.eq.s32.totalorder %s37, 0
      %p154 = por %p152, %p153
      %p155 = scmp.ne.s32.totalorder %s143, %s144
      %p156 = scmp.eq.s32.totalorder %s38, 1
      %p157 = por %p155, %p156
      %p159 = scmp.ne.s32.totalorder %s144, %s158
      %p160 = scmp.eq.s32.totalorder %s38, 0
      %p161 = por %p159, %p160
      %s163 = sadd.s32 %s162, 1
      %p166 = scmp.eq.s32.totalorder %s32, 1
      %p167 = scmp.ne.s32.totalorder %s162, %s164
      %p168 = scmp.eq.s32.totalorder %s32, 0
      %p169 = por %p167, %p168
      %p170 = scmp.ne.s32.totalorder %s162, %s164
      %p171 = scmp.eq.s32.totalorder %s37, 1
      %p172 = por %p170, %p171
      %p173 = scmp.ne.s32.totalorder %s164, %s165
      %p174 = scmp.eq.s32.totalorder %s37, 0
      %p175 = por %p173, %p174
      %p176 = scmp.ne.s32.totalorder %s164, %s165
      %p177 = scmp.eq.s32.totalorder %s38, 1
      %p178 = por %p176, %p177
      %p180 = scmp.ne.s32.totalorder %s165, %s179
      %p181 = scmp.eq.s32.totalorder %s38, 0
      %p182 = por %p180, %p181
      %s184 = sadd.s32 %s183, 1
      %p187 = scmp.eq.s32.totalorder %s32, 1
      %p188 = scmp.ne.s32.totalorder %s183, %s185
      %p189 = scmp.eq.s32.totalorder %s32, 0
      %p190 = por %p188, %p189
      %p191 = scmp.ne.s32.totalorder %s183, %s185
      %p192 = scmp.eq.s32.totalorder %s37, 1
      %p193 = por %p191, %p192
      %p194 = scmp.ne.s32.totalorder %s185, %s186
      %p195 = scmp.eq.s32.totalorder %s37, 0
      %p196 = por %p194, %p195
      %p197 = scmp.ne.s32.totalorder %s185, %s186
      %p198 = scmp.eq.s32.totalorder %s38, 1
      %p199 = por %p197, %p198
      %p201 = scmp.ne.s32.totalorder %s186, %s200
      %p202 = scmp.eq.s32.totalorder %s38, 0
      %p203 = por %p201, %p202
      %s205 = sadd.s32 %s204, 1
      %p208 = scmp.eq.s32.totalorder %s32, 1
      %p209 = scmp.ne.s32.totalorder %s204, %s206
      %p210 = scmp.eq.s32.totalorder %s32, 0
      %p211 = por %p209, %p210
      %p212 = scmp.ne.s32.totalorder %s204, %s206
      %p213 = scmp.eq.s32.totalorder %s37, 1
      %p214 = por %p212, %p213
      %p215 = scmp.ne.s32.totalorder %s206, %s207
      %p216 = scmp.eq.s32.totalorder %s37, 0
      %p217 = por %p215, %p216
      %p218 = scmp.ne.s32.totalorder %s206, %s207
      %p219 = scmp.eq.s32.totalorder %s38, 1
      %p220 = por %p218, %p219
      %p222 = scmp.ne.s32.totalorder %s207, %s221
      %p223 = scmp.eq.s32.totalorder %s38, 0
      %p224 = por %p222, %p223
      %s226 = sadd.s32 %s225, 1
      %p229 = scmp.eq.s32.totalorder %s32, 1
      %p230 = scmp.ne.s32.totalorder %s225, %s227
      %p231 = scmp.eq.s32.totalorder %s32, 0
      %p232 = por %p230, %p231
      %p233 = scmp.ne.s32.totalorder %s225, %s227
      %p234 = scmp.eq.s32.totalorder %s37, 1
      %p235 = por %p233, %p234
      %p236 = scmp.ne.s32.totalorder %s227, %s228
      %p237 = scmp.eq.s32.totalorder %s37, 0
      %p238 = por %p236, %p237
      %p239 = scmp.ne.s32.totalorder %s227, %s228
      %p240 = scmp.eq.s32.totalorder %s38, 1
      %p241 = por %p239, %p240
      %p243 = scmp.ne.s32.totalorder %s228, %s242
      %p244 = scmp.eq.s32.totalorder %s38, 0
      %p245 = por %p243, %p244
      %s246 = ssub.s32 %s40, %s47
      %p247 = scmp.eq.s32.totalorder %s246, 0
      %s249 = sadd.s32 %s248, 1
      %s250 = scalar_select %p247, %s248, %s249
      %p253 = pneg %p247
      %p254 = scmp.eq.s32.totalorder %s32, 1
      %p255 = por %p253, %p254
      %p256 = scmp.ne.s32.totalorder %s248, %s251
      %p257 = scmp.eq.s32.totalorder %s32, 0
      %p258 = por %p256, %p257
      %p259 = scmp.ne.s32.totalorder %s248, %s251
      %p260 = scmp.eq.s32.totalorder %s37, 1
      %p261 = por %p259, %p260
      %p262 = scmp.ne.s32.totalorder %s251, %s252
      %p263 = scmp.eq.s32.totalorder %s37, 0
      %p264 = por %p262, %p263
      %p265 = scmp.ne.s32.totalorder %s251, %s252
      %p266 = scmp.eq.s32.totalorder %s38, 1
      %p267 = por %p265, %p266
      %p269 = scmp.ne.s32.totalorder %s252, %s268
      %p270 = scmp.eq.s32.totalorder %s38, 0
      %p271 = por %p269, %p270
      %s272 = ssub.s32 %s39, %s51
      %s273 = ssub.s32 %s40, %s47
      %s274 = sor.u32 %s272, %s273
      %p275 = scmp.eq.s32.totalorder %s274, 0
      %s277 = sadd.s32 %s276, 1
      %s278 = scalar_select %p275, %s276, %s277
      %p281 = pneg %p275
      %p282 = scmp.eq.s32.totalorder %s32, 1
      %p283 = por %p281, %p282
      %p284 = scmp.ne.s32.totalorder %s276, %s279
      %p285 = scmp.eq.s32.totalorder %s32, 0
      %p286 = por %p284, %p285
      %p287 = scmp.ne.s32.totalorder %s276, %s279
      %p288 = scmp.eq.s32.totalorder %s37, 1
      %p289 = por %p287, %p288
      %p290 = scmp.ne.s32.totalorder %s279, %s280
      %p291 = scmp.eq.s32.totalorder %s37, 0
      %p292 = por %p290, %p291
      %p293 = scmp.ne.s32.totalorder %s279, %s280
      %p294 = scmp.eq.s32.totalorder %s38, 1
      %p295 = por %p293, %p294
      %p297 = scmp.ne.s32.totalorder %s280, %s296
      %p298 = scmp.eq.s32.totalorder %s38, 0
      %p299 = por %p297, %p298
      %s300 = ssub.s32 %s39, %s51
      %s301 = ssub.s32 %s40, %s47
      %s302 = sor.u32 %s300, %s301
      %p303 = scmp.eq.s32.totalorder %s302, 0
      %s305 = sadd.s32 %s304, 1
      %s306 = scalar_select %p303, %s304, %s305
      %p309 = pneg %p303
      %p310 = scmp.eq.s32.totalorder %s32, 1
      %p311 = por %p309, %p310
      %p312 = scmp.ne.s32.totalorder %s304, %s307
      %p313 = scmp.eq.s32.totalorder %s32, 0
      %p314 = por %p312, %p313
      %p315 = scmp.ne.s32.totalorder %s304, %s307
      %p316 = scmp.eq.s32.totalorder %s37, 1
      %p317 = por %p315, %p316
      %p318 = scmp.ne.s32.totalorder %s307, %s308
      %p319 = scmp.eq.s32.totalorder %s37, 0
      %p320 = por %p318, %p319
      %p321 = scmp.ne.s32.totalorder %s307, %s308
      %p322 = scmp.eq.s32.totalorder %s38, 1
      %p323 = por %p321, %p322
      %p325 = scmp.ne.s32.totalorder %s308, %s324
      %p326 = scmp.eq.s32.totalorder %s38, 0
      %p327 = por %p325, %p326
      %p328 = scmp.le.s32.totalorder 1, %s32
      %p329 = scmp.lt.s32.totalorder %s32, 3
      %p330 = pnand %p328, %p329
      %p331 = pneg %p330
      // Predicated region
      $region9: #{tpu_custom_call.1} parent=5 // pred_check
        _
      $region10: #{tpu_custom_call.1} parent=5 // pred_check_branch
        %333 = sbr.rel (%p330) target = $region12
      $region11: #{tpu_custom_call.1} parent=5 // pred_region
        %s334 = ssub.s32 %s32, 1
        // Predicated region
        $region13: #{tpu_custom_call.1} parent=11 // pred_check
          %p335 = pneg %p91
        $region14: #{tpu_custom_call.1} parent=11 // pred_check_branch
          %337 = sbr.rel (%p335) target = $region16
        $region15: #{tpu_custom_call.1} parent=11 // pred_region
          %s339 = ssub.s32 512, 512
          %340 = vsyncadd [#allocation8], %s339
          %s341 = sshll.u32 [#allocation7], 4
          %s342 = int_to_ptr.vmem [resolvable:$true] %s341
          %347 = dma.hbm_to_vmem [thread:$0]  %s1, 512, %s342, [#allocation8], 128, 128, 8
        $region16: #{tpu_custom_call.1} parent=11 // pred_fallthru
          _
        // Predicated region
        $region17: #{tpu_custom_call.1} parent=11 // pred_check
          %p348 = pneg %p112
        $region18: #{tpu_custom_call.1} parent=11 // pred_check_branch
          %350 = sbr.rel (%p348) target = $region20
        $region19: #{tpu_custom_call.1} parent=11 // pred_region
          %s352 = ssub.s32 16, 16
          %353 = vsyncadd [#allocation8], %s352
          %s355 = sshll.u32 [#allocation9], 4
          %s356 = int_to_ptr.vmem [resolvable:$true] %s355
          %358 = dma.hbm_to_vmem [thread:$0]  %s2, 16, %s356, [#allocation8]
        $region20: #{tpu_custom_call.1} parent=11 // pred_fallthru
          _
        // Predicated region
        $region21: #{tpu_custom_call.1} parent=11 // pred_check
          %p359 = pneg %p133
        $region22: #{tpu_custom_call.1} parent=11 // pred_check_branch
          %361 = sbr.rel (%p359) target = $region24
        $region23: #{tpu_custom_call.1} parent=11 // pred_region
          %s363 = ssub.s32 512, 512
          %364 = vsyncadd [#allocation11], %s363
          %s365 = sshll.u32 [#allocation10], 4
          %s366 = int_to_ptr.vmem [resolvable:$true] %s365
          %371 = dma.hbm_to_vmem [thread:$0]  %s3, 512, %s366, [#allocation11], 128, 128, 8
        $region24: #{tpu_custom_call.1} parent=11 // pred_fallthru
          _
        // Predicated region
        $region25: #{tpu_custom_call.1} parent=11 // pred_check
          %p372 = pneg %p154
        $region26: #{tpu_custom_call.1} parent=11 // pred_check_branch
          %374 = sbr.rel (%p372) target = $region28
        $region27: #{tpu_custom_call.1} parent=11 // pred_region
          %s376 = ssub.s32 16, 16
          %377 = vsyncadd [#allocation11], %s376
          %s379 = sshll.u32 [#allocation12], 4
          %s380 = int_to_ptr.vmem [resolvable:$true] %s379
          %382 = dma.hbm_to_vmem [thread:$0]  %s4, 16, %s380, [#allocation11]
        $region28: #{tpu_custom_call.1} parent=11 // pred_fallthru
          _
        // Predicated region
        $region29: #{tpu_custom_call.1} parent=11 // pred_check
          %p383 = pneg %p175
        $region30: #{tpu_custom_call.1} parent=11 // pred_check_branch
          %385 = sbr.rel (%p383) target = $region32
        $region31: #{tpu_custom_call.1} parent=11 // pred_region
          %s387 = ssub.s32 512, 512
          %388 = vsyncadd [#allocation14], %s387
          %s389 = sshll.u32 [#allocation13], 4
          %s390 = int_to_ptr.vmem [resolvable:$true] %s389
          %395 = dma.hbm_to_vmem [thread:$0]  %s5, 512, %s390, [#allocation14], 128, 128, 8
        $region32: #{tpu_custom_call.1} parent=11 // pred_fallthru
          _
        // Predicated region
        $region33: #{tpu_custom_call.1} parent=11 // pred_check
          %p396 = pneg %p196
        $region34: #{tpu_custom_call.1} parent=11 // pred_check_branch
          %398 = sbr.rel (%p396) target = $region36
        $region35: #{tpu_custom_call.1} parent=11 // pred_region
          %s400 = ssub.s32 16, 16
          %401 = vsyncadd [#allocation14], %s400
          %s403 = sshll.u32 [#allocation15], 4
          %s404 = int_to_ptr.vmem [resolvable:$true] %s403
          %406 = dma.hbm_to_vmem [thread:$0]  %s6, 16, %s404, [#allocation14]
        $region36: #{tpu_custom_call.1} parent=11 // pred_fallthru
          _
        // Predicated region
        $region37: #{tpu_custom_call.1} parent=11 // pred_check
          %p407 = pneg %p217
        $region38: #{tpu_custom_call.1} parent=11 // pred_check_branch
          %409 = sbr.rel (%p407) target = $region40
        $region39: #{tpu_custom_call.1} parent=11 // pred_region
          %s411 = ssub.s32 512, 512
          %412 = vsyncadd [#allocation17], %s411
          %s413 = sshll.u32 [#allocation16], 4
          %s414 = int_to_ptr.vmem [resolvable:$true] %s413
          %419 = dma.hbm_to_vmem [thread:$0]  %s7, 512, %s414, [#allocation17], 128, 128, 8
        $region40: #{tpu_custom_call.1} parent=11 // pred_fallthru
          _
        // Predicated region
        $region41: #{tpu_custom_call.1} parent=11 // pred_check
          %p420 = pneg %p238
        $region42: #{tpu_custom_call.1} parent=11 // pred_check_branch
          %422 = sbr.rel (%p420) target = $region44
        $region43: #{tpu_custom_call.1} parent=11 // pred_region
          %s424 = ssub.s32 16, 16
          %425 = vsyncadd [#allocation17], %s424
          %s427 = sshll.u32 [#allocation18], 4
          %s428 = int_to_ptr.vmem [resolvable:$true] %s427
          %430 = dma.hbm_to_vmem [thread:$0]  %s8, 16, %s428, [#allocation17]
        $region44: #{tpu_custom_call.1} parent=11 // pred_fallthru
          _
        // Predicated region
        $region45: #{tpu_custom_call.1} parent=11 // pred_check
          %p431 = pneg %p264
        $region46: #{tpu_custom_call.1} parent=11 // pred_check_branch
          %433 = sbr.rel (%p431) target = $region48
        $region47: #{tpu_custom_call.1} parent=11 // pred_region
          %s435 = ssub.s32 128, 128
          %436 = vsyncadd [#allocation20], %s435
          %s437 = smul.addr %s42, 128
          %s438 = scalar_lea.hbm %s9, %s437
          %s440 = sshll.u32 [#allocation19], 4
          %s441 = int_to_ptr.vmem [resolvable:$true] %s440
          %443 = dma.hbm_to_vmem [thread:$0]  %s438, 128, %s441, [#allocation20]
        $region48: #{tpu_custom_call.1} parent=11 // pred_fallthru
          _
      $region12: #{tpu_custom_call.1} parent=5 // pred_fallthru
        _
      %p444 = scmp.lt.s32.totalorder %s32, 2
      // Predicated region
      $region49: #{tpu_custom_call.1} parent=5 // pred_check
        %p445 = pneg %p444
      $region50: #{tpu_custom_call.1} parent=5 // pred_check_branch
        %447 = sbr.rel (%p445) target = $region52
      $region51: #{tpu_custom_call.1} parent=5 // pred_region
        // Predicated region
        $region53: #{tpu_custom_call.1} parent=51 // pred_check
          %p448 = pneg %p64
        $region54: #{tpu_custom_call.1} parent=51 // pred_check_branch
          %450 = sbr.rel (%p448) target = $region56
        $region55: #{tpu_custom_call.1} parent=51 // pred_region
          %s451 = sand.u32 %s54, 1
          %s452 = scalar_lea.sflag [#allocation5], %s451
          %s453 = sand.u32 %s54, 1
          %s454 = smul.addr %s453, 8
          %s455 = scalar_lea.vmem [#allocation4], %s454
          %s457 = ssub.s32 128, 128
          %458 = vsyncadd %s452, %s457
          %s459 = smul.addr %s39, 128
          %s460 = scalar_lea.hbm %s0, %s459
          %s462 = sshll.u32 %s455, 4
          %s463 = int_to_ptr.vmem [resolvable:$true] %s462
          %465 = dma.hbm_to_vmem [thread:$0]  %s460, 128, %s463, %s452
        $region56: #{tpu_custom_call.1} parent=51 // pred_fallthru
          _
      $region52: #{tpu_custom_call.1} parent=5 // pred_fallthru
        _
      %p466 = scmp.le.s32.totalorder 1, %s32
      %p467 = scmp.lt.s32.totalorder %s32, 3
      %p468 = pnand %p466, %p467
      %p469 = pneg %p468
      // Predicated region
      $region57: #{tpu_custom_call.1} parent=5 // pred_check
        _
      $region58: #{tpu_custom_call.1} parent=5 // pred_check_branch
        %471 = sbr.rel (%p468) target = $region60
      $region59: #{tpu_custom_call.1} parent=5 // pred_region
        %s472 = ssub.s32 %s32, 1
        %s473 = sand.u32 %s57, 1
        %s474 = scalar_lea.sflag [#allocation5], %s473
        %s475 = sand.u32 %s57, 1
        %s476 = smul.addr %s475, 8
        %s477 = scalar_lea.vmem [#allocation4], %s476
        // Predicated region
        $region61: #{tpu_custom_call.1} parent=59 // pred_check
          %p478 = pneg %p70
        $region62: #{tpu_custom_call.1} parent=59 // pred_check_branch
          %480 = sbr.rel (%p478) target = $region64
        $region63: #{tpu_custom_call.1} parent=59 // pred_region
          %481 = dma.done %s474, 128
        $region64: #{tpu_custom_call.1} parent=59 // pred_fallthru
          _
        // Predicated region
        $region65: #{tpu_custom_call.1} parent=59 // pred_check
          %p482 = pneg %p91
        $region66: #{tpu_custom_call.1} parent=59 // pred_check_branch
          %484 = sbr.rel (%p482) target = $region68
        $region67: #{tpu_custom_call.1} parent=59 // pred_region
          %485 = dma.done [#allocation8], 512
        $region68: #{tpu_custom_call.1} parent=59 // pred_fallthru
          _
        // Predicated region
        $region69: #{tpu_custom_call.1} parent=59 // pred_check
          %p486 = pneg %p112
        $region70: #{tpu_custom_call.1} parent=59 // pred_check_branch
          %488 = sbr.rel (%p486) target = $region72
        $region71: #{tpu_custom_call.1} parent=59 // pred_region
          %489 = dma.done [#allocation8], 16
        $region72: #{tpu_custom_call.1} parent=59 // pred_fallthru
          _
        // Predicated region
        $region73: #{tpu_custom_call.1} parent=59 // pred_check
          %p490 = pneg %p133
        $region74: #{tpu_custom_call.1} parent=59 // pred_check_branch
          %492 = sbr.rel (%p490) target = $region76
        $region75: #{tpu_custom_call.1} parent=59 // pred_region
          %493 = dma.done [#allocation11], 512
        $region76: #{tpu_custom_call.1} parent=59 // pred_fallthru
          _
        // Predicated region
        $region77: #{tpu_custom_call.1} parent=59 // pred_check
          %p494 = pneg %p154
        $region78: #{tpu_custom_call.1} parent=59 // pred_check_branch
          %496 = sbr.rel (%p494) target = $region80
        $region79: #{tpu_custom_call.1} parent=59 // pred_region
          %497 = dma.done [#allocation11], 16
        $region80: #{tpu_custom_call.1} parent=59 // pred_fallthru
          _
        // Predicated region
        $region81: #{tpu_custom_call.1} parent=59 // pred_check
          %p498 = pneg %p175
        $region82: #{tpu_custom_call.1} parent=59 // pred_check_branch
          %500 = sbr.rel (%p498) target = $region84
        $region83: #{tpu_custom_call.1} parent=59 // pred_region
          %501 = dma.done [#allocation14], 512
        $region84: #{tpu_custom_call.1} parent=59 // pred_fallthru
          _
        // Predicated region
        $region85: #{tpu_custom_call.1} parent=59 // pred_check
          %p502 = pneg %p196
        $region86: #{tpu_custom_call.1} parent=59 // pred_check_branch
          %504 = sbr.rel (%p502) target = $region88
        $region87: #{tpu_custom_call.1} parent=59 // pred_region
          %505 = dma.done [#allocation14], 16
        $region88: #{tpu_custom_call.1} parent=59 // pred_fallthru
          _
        // Predicated region
        $region89: #{tpu_custom_call.1} parent=59 // pred_check
          %p506 = pneg %p217
        $region90: #{tpu_custom_call.1} parent=59 // pred_check_branch
          %508 = sbr.rel (%p506) target = $region92
        $region91: #{tpu_custom_call.1} parent=59 // pred_region
          %509 = dma.done [#allocation17], 512
        $region92: #{tpu_custom_call.1} parent=59 // pred_fallthru
          _
        // Predicated region
        $region93: #{tpu_custom_call.1} parent=59 // pred_check
          %p510 = pneg %p238
        $region94: #{tpu_custom_call.1} parent=59 // pred_check_branch
          %512 = sbr.rel (%p510) target = $region96
        $region95: #{tpu_custom_call.1} parent=59 // pred_region
          %513 = dma.done [#allocation17], 16
        $region96: #{tpu_custom_call.1} parent=59 // pred_fallthru
          _
        // Predicated region
        $region97: #{tpu_custom_call.1} parent=59 // pred_check
          %p514 = pneg %p264
        $region98: #{tpu_custom_call.1} parent=59 // pred_check_branch
          %516 = sbr.rel (%p514) target = $region100
        $region99: #{tpu_custom_call.1} parent=59 // pred_region
          %517 = dma.done [#allocation20], 128
        $region100: #{tpu_custom_call.1} parent=59 // pred_fallthru
          _
        %s518 = sand.u32 %s57, 1
        %s519 = scalar_lea.sflag [#allocation5], %s518
        %s520 = sand.u32 %s57, 1
        %s521 = smul.addr %s520, 8
        %s522 = scalar_lea.vmem [#allocation4], %s521
        %p523 = pneg %p70
        %p524 = pneg %p67
        %p525 = pneg %p91
        %p526 = pneg %p88
        %p527 = pneg %p112
        %p528 = pneg %p109
        %p529 = pneg %p133
        %p530 = pneg %p130
        %p531 = pneg %p154
        %p532 = pneg %p151
        %p533 = pneg %p175
        %p534 = pneg %p172
        %p535 = pneg %p196
        %p536 = pneg %p193
        %p537 = pneg %p217
        %p538 = pneg %p214
        %p539 = pneg %p238
        %p540 = pneg %p235
        %p541 = pneg %p264
        %p542 = pneg %p261
        %p543 = pneg %p292
        %p544 = pneg %p289
        %s545 = sand.u32 %s279, 1
        %s546 = scalar_lea.sflag [#allocation6], %s545
        %s547 = sand.u32 %s279, 1
        %s548 = smul.addr %s547, 8
        %s549 = scalar_lea.vmem [#allocation21], %s548
        %p550 = pneg %p320
        %p551 = pneg %p317
        %s552 = sand.u32 %s307, 1
        %s553 = scalar_lea.sflag [#allocation23], %s552
        %s554 = sand.u32 %s307, 1
        %s555 = smul.addr %s554, 32
        %s556 = scalar_lea.vmem [#allocation22], %s555
        %p557 = scmp.eq.s32.totalorder %s42, 0
        // Predicated region
        $region101: #{tpu_custom_call.1} parent=59 // pred_check
          %p558 = pneg %p557
        $region102: #{tpu_custom_call.1} parent=59 // pred_check_branch
          %560 = sbr.rel (%p558) target = $region104
        $region103: #{tpu_custom_call.1} parent=59 // pred_region
          %v561 = vld [vmem:[%s477] sm:$0xff]
          %v562 = vld [vmem:[#allocation10] sm:$0xff]
          %v563 = vld [vmem:[#allocation10 + $0x8] sm:$0xff]
          %v564 = vld [vmem:[#allocation10 + $0x10] sm:$0xff]
          %v565 = vld [vmem:[#allocation10 + $0x18] sm:$0xff]
          %v566 = vld [vmem:[#allocation12] sm:$0x1]
          %v568 = vlaneseq
          %v569 = vshrl.u32 %v568, 7
          %v570 = vsub.s32 0, %v569
          %v571 = vrot.slane %v566, %v570
          %vm573 = vcmask 261120
          %v575 = vsel %vm573, %v561, 0
          %577 = vmatprep.subr.mxu0 0.0
          %578 = vmatpush1.msra.mxu0 %v562
          %579 = vmatprep.subr.mxu0 0.0
          %580 = vmatpush1.msra.mxu0 %v563
          %581 = vmatprep.subr.mxu0 0.0
          %582 = vmatpush1.msra.mxu0 %v564
          %583 = vmatprep.subr.mxu0 0.0
          %584 = vmatpush1.msra.mxu0 %v565
          %585 = vmatprep.subr.mxu0 0.0
          %586 = vmatpush1.msra.mxu0 0.0
          %587 = vmatprep.subr.mxu0 0.0
          %588 = vmatpush1.msra.mxu0 0.0
          %589 = vmatprep.subr.mxu0 0.0
          %590 = vmatpush1.msra.mxu0 0.0
          %591 = vmatprep.subr.mxu0 0.0
          %592 = vmatpush1.msra.mxu0 0.0
          %593 = vmatprep.subr.mxu0 0.0
          %594 = vmatpush1.msra.mxu0 0.0
          %595 = vmatprep.subr.mxu0 0.0
          %596 = vmatpush1.msra.mxu0 0.0
          %597 = vmatprep.subr.mxu0 0.0
          %598 = vmatpush1.msra.mxu0 0.0
          %599 = vmatprep.subr.mxu0 0.0
          %600 = vmatpush1.msra.mxu0 0.0
          %601 = vmatprep.subr.mxu0 0.0
          %602 = vmatpush1.msra.mxu0 0.0
          %603 = vmatprep.subr.mxu0 0.0
          %604 = vmatpush1.msra.mxu0 0.0
          %605 = vmatprep.subr.mxu0 0.0
          %606 = vmatpush1.msra.mxu0 0.0
          %607 = vmatprep.subr.mxu0 0.0
          %608 = vmatpush1.msra.mxu0 0.0
          %609 = vmatprep.subr.mxu0 0.0
          %610 = vmatpush1.msra.mxu0 0.0
          %611 = vmatprep.subr.mxu0 0.0
          %612 = vmatpush1.msra.mxu0 0.0
          %613 = vmatprep.subr.mxu0 0.0
          %614 = vmatpush1.msra.mxu0 0.0
          %615 = vmatprep.subr.mxu0 0.0
          %616 = vmatpush1.msra.mxu0 0.0
          %617 = vmatprep.subr.mxu0 0.0
          %618 = vmatpush1.msra.mxu0 0.0
          %619 = vmatprep.subr.mxu0 0.0
          %620 = vmatpush1.msra.mxu0 0.0
          %621 = vmatprep.subr.mxu0 0.0
          %622 = vmatpush1.msra.mxu0 0.0
          %623 = vmatprep.subr.mxu0 0.0
          %624 = vmatpush1.msra.mxu0 0.0
          %625 = vmatprep.subr.mxu0 0.0
          %626 = vmatpush1.msra.mxu0 0.0
          %627 = vmatprep.subr.mxu0 0.0
          %628 = vmatpush1.msra.mxu0 0.0
          %629 = vmatprep.subr.mxu0 0.0
          %630 = vmatpush1.msra.mxu0 0.0
          %631 = vmatprep.subr.mxu0 0.0
          %632 = vmatpush1.msra.mxu0 0.0
          %633 = vmatprep.subr.mxu0 0.0
          %634 = vmatpush1.msra.mxu0 0.0
          %635 = vmatprep.subr.mxu0 0.0
          %636 = vmatpush1.msra.mxu0 0.0
          %637 = vmatprep.subr.mxu0 0.0
          %638 = vmatpush1.msra.mxu0 0.0
          %639 = vmatprep.subr.mxu0 0.0
          %640 = vmatpush1.msra.mxu0 0.0
          %641 = vmatprep.mubr.f32.mxu0 0.0
          %642 = vmatmul.mubr.f32.gmra.mrb[0].mxu0 %v575
          %v643 = vpop.f32.mrb[0].mxu0
          %v644 = vadd.f32 %v571, %v643
          %v645 = vpop.f32.mrb[0].mxu0
          %646 = vdwg.mxu0
          %v647 = vld [vmem:[#allocation13] sm:$0xff]
          %v648 = vld [vmem:[#allocation13 + $0x8] sm:$0xff]
          %v649 = vld [vmem:[#allocation13 + $0x10] sm:$0xff]
          %v650 = vld [vmem:[#allocation13 + $0x18] sm:$0xff]
          %v651 = vld [vmem:[#allocation15] sm:$0x1]
          %v653 = vlaneseq
          %v654 = vshrl.u32 %v653, 7
          %v655 = vsub.s32 0, %v654
          %v656 = vrot.slane %v651, %v655
          %658 = vmatprep.subr.mxu0 0.0
          %659 = vmatpush1.msra.mxu0 %v647
          %660 = vmatprep.subr.mxu0 0.0
          %661 = vmatpush1.msra.mxu0 %v648
          %662 = vmatprep.subr.mxu0 0.0
          %663 = vmatpush1.msra.mxu0 %v649
          %664 = vmatprep.subr.mxu0 0.0
          %665 = vmatpush1.msra.mxu0 %v650
          %666 = vmatprep.subr.mxu0 0.0
          %667 = vmatpush1.msra.mxu0 0.0
          %668 = vmatprep.subr.mxu0 0.0
          %669 = vmatpush1.msra.mxu0 0.0
          %670 = vmatprep.subr.mxu0 0.0
          %671 = vmatpush1.msra.mxu0 0.0
          %672 = vmatprep.subr.mxu0 0.0
          %673 = vmatpush1.msra.mxu0 0.0
          %674 = vmatprep.subr.mxu0 0.0
          %675 = vmatpush1.msra.mxu0 0.0
          %676 = vmatprep.subr.mxu0 0.0
          %677 = vmatpush1.msra.mxu0 0.0
          %678 = vmatprep.subr.mxu0 0.0
          %679 = vmatpush1.msra.mxu0 0.0
          %680 = vmatprep.subr.mxu0 0.0
          %681 = vmatpush1.msra.mxu0 0.0
          %682 = vmatprep.subr.mxu0 0.0
          %683 = vmatpush1.msra.mxu0 0.0
          %684 = vmatprep.subr.mxu0 0.0
          %685 = vmatpush1.msra.mxu0 0.0
          %686 = vmatprep.subr.mxu0 0.0
          %687 = vmatpush1.msra.mxu0 0.0
          %688 = vmatprep.subr.mxu0 0.0
          %689 = vmatpush1.msra.mxu0 0.0
          %690 = vmatprep.subr.mxu0 0.0
          %691 = vmatpush1.msra.mxu0 0.0
          %692 = vmatprep.subr.mxu0 0.0
          %693 = vmatpush1.msra.mxu0 0.0
          %694 = vmatprep.subr.mxu0 0.0
          %695 = vmatpush1.msra.mxu0 0.0
          %696 = vmatprep.subr.mxu0 0.0
          %697 = vmatpush1.msra.mxu0 0.0
          %698 = vmatprep.subr.mxu0 0.0
          %699 = vmatpush1.msra.mxu0 0.0
          %700 = vmatprep.subr.mxu0 0.0
          %701 = vmatpush1.msra.mxu0 0.0
          %702 = vmatprep.subr.mxu0 0.0
          %703 = vmatpush1.msra.mxu0 0.0
          %704 = vmatprep.subr.mxu0 0.0
          %705 = vmatpush1.msra.mxu0 0.0
          %706 = vmatprep.subr.mxu0 0.0
          %707 = vmatpush1.msra.mxu0 0.0
          %708 = vmatprep.subr.mxu0 0.0
          %709 = vmatpush1.msra.mxu0 0.0
          %710 = vmatprep.subr.mxu0 0.0
          %711 = vmatpush1.msra.mxu0 0.0
          %712 = vmatprep.subr.mxu0 0.0
          %713 = vmatpush1.msra.mxu0 0.0
          %714 = vmatprep.subr.mxu0 0.0
          %715 = vmatpush1.msra.mxu0 0.0
          %716 = vmatprep.subr.mxu0 0.0
          %717 = vmatpush1.msra.mxu0 0.0
          %718 = vmatprep.subr.mxu0 0.0
          %719 = vmatpush1.msra.mxu0 0.0
          %720 = vmatprep.subr.mxu0 0.0
          %721 = vmatpush1.msra.mxu0 0.0
          %722 = vmatprep.mubr.f32.mxu0 0.0
          %723 = vmatmul.mubr.f32.gmra.mrb[0].mxu0 %v575
          %v724 = vpop.f32.mrb[0].mxu0
          %v725 = vadd.f32 %v656, %v724
          %v726 = vpop.f32.mrb[0].mxu0
          %727 = vdwg.mxu0
          %728 = vst.msk [vmem:[#allocation2] sm:$0xff] %vm573, %v644
          %729 = vst.msk [vmem:[#allocation3] sm:$0xff] %vm573, %v725
        $region104: #{tpu_custom_call.1} parent=59 // pred_fallthru
          _
        %s730 = smul.u32 %s42, 8
        %s731 = scalar_lea.vmem %s477, %s730 [#allocation4]
        %v732 = vld [vmem:[%s731] sm:$0xff]
        %v733 = vld [vmem:[#allocation7] sm:$0xff]
        %v734 = vld [vmem:[#allocation7 + $0x8] sm:$0xff]
        %v735 = vld [vmem:[#allocation7 + $0x10] sm:$0xff]
        %v736 = vld [vmem:[#allocation7 + $0x18] sm:$0xff]
        %v737 = vld [vmem:[#allocation9] sm:$0x1]
        %v739 = vlaneseq
        %v740 = vshrl.u32 %v739, 7
        %v741 = vsub.s32 0, %v740
        %v742 = vrot.slane %v737, %v741
        %vm744 = vcmask 261120
        %v746 = vsel %vm744, %v732, 0
        %748 = vmatprep.subr.mxu0 0.0
        %749 = vmatpush1.msra.mxu0 %v733
        %750 = vmatprep.subr.mxu0 0.0
        %751 = vmatpush1.msra.mxu0 %v734
        %752 = vmatprep.subr.mxu0 0.0
        %753 = vmatpush1.msra.mxu0 %v735
        %754 = vmatprep.subr.mxu0 0.0
        %755 = vmatpush1.msra.mxu0 %v736
        %756 = vmatprep.subr.mxu0 0.0
        %757 = vmatpush1.msra.mxu0 0.0
        %758 = vmatprep.subr.mxu0 0.0
        %759 = vmatpush1.msra.mxu0 0.0
        %760 = vmatprep.subr.mxu0 0.0
        %761 = vmatpush1.msra.mxu0 0.0
        %762 = vmatprep.subr.mxu0 0.0
        %763 = vmatpush1.msra.mxu0 0.0
        %764 = vmatprep.subr.mxu0 0.0
        %765 = vmatpush1.msra.mxu0 0.0
        %766 = vmatprep.subr.mxu0 0.0
        %767 = vmatpush1.msra.mxu0 0.0
        %768 = vmatprep.subr.mxu0 0.0
        %769 = vmatpush1.msra.mxu0 0.0
        %770 = vmatprep.subr.mxu0 0.0
        %771 = vmatpush1.msra.mxu0 0.0
        %772 = vmatprep.subr.mxu0 0.0
        %773 = vmatpush1.msra.mxu0 0.0
        %774 = vmatprep.subr.mxu0 0.0
        %775 = vmatpush1.msra.mxu0 0.0
        %776 = vmatprep.subr.mxu0 0.0
        %777 = vmatpush1.msra.mxu0 0.0
        %778 = vmatprep.subr.mxu0 0.0
        %779 = vmatpush1.msra.mxu0 0.0
        %780 = vmatprep.subr.mxu0 0.0
        %781 = vmatpush1.msra.mxu0 0.0
        %782 = vmatprep.subr.mxu0 0.0
        %783 = vmatpush1.msra.mxu0 0.0
        %784 = vmatprep.subr.mxu0 0.0
        %785 = vmatpush1.msra.mxu0 0.0
        %786 = vmatprep.subr.mxu0 0.0
        %787 = vmatpush1.msra.mxu0 0.0
        %788 = vmatprep.subr.mxu0 0.0
        %789 = vmatpush1.msra.mxu0 0.0
        %790 = vmatprep.subr.mxu0 0.0
        %791 = vmatpush1.msra.mxu0 0.0
        %792 = vmatprep.subr.mxu0 0.0
        %793 = vmatpush1.msra.mxu0 0.0
        %794 = vmatprep.subr.mxu0 0.0
        %795 = vmatpush1.msra.mxu0 0.0
        %796 = vmatprep.subr.mxu0 0.0
        %797 = vmatpush1.msra.mxu0 0.0
        %798 = vmatprep.subr.mxu0 0.0
        %799 = vmatpush1.msra.mxu0 0.0
        %800 = vmatprep.subr.mxu0 0.0
        %801 = vmatpush1.msra.mxu0 0.0
        %802 = vmatprep.subr.mxu0 0.0
        %803 = vmatpush1.msra.mxu0 0.0
        %804 = vmatprep.subr.mxu0 0.0
        %805 = vmatpush1.msra.mxu0 0.0
        %806 = vmatprep.subr.mxu0 0.0
        %807 = vmatpush1.msra.mxu0 0.0
        %808 = vmatprep.subr.mxu0 0.0
        %809 = vmatpush1.msra.mxu0 0.0
        %810 = vmatprep.subr.mxu0 0.0
        %811 = vmatpush1.msra.mxu0 0.0
        %812 = vmatprep.mubr.f32.mxu0 0.0
        %813 = vmatmul.mubr.f32.gmra.mrb[0].mxu0 %v746
        %v814 = vpop.f32.mrb[0].mxu0
        %v815 = vadd.f32 %v742, %v814
        %v816 = vpop.f32.mrb[0].mxu0
        %817 = vdwg.mxu0
        %v818 = vmul.f32 %v815, 0.35355338
        %v819 = vld [vmem:[#allocation2] sm:$0xff]
        %v820 = vld [vmem:[#allocation3] sm:$0xff]
        %v821 = vld [vmem:[#allocation19] sm:$0xff]
        %vm822 = vcmask 64512
        %v824 = vsel %vm822, %v818, 0
        %v827 = vsel %vm822, %v819, 0
        %829 = vmatprep.subr.mxu0 0.0
        %830 = vmatpush1.xpose.msra.mxu0 %v827
        %831 = vmatprep.subr.mxu0 0.0
        %832 = vmatpush1.xpose.msra.mxu0 0.0
        %833 = vmatprep.subr.mxu0 0.0
        %834 = vmatpush1.xpose.msra.mxu0 0.0
        %835 = vmatprep.subr.mxu0 0.0
        %836 = vmatpush1.xpose.msra.mxu0 0.0
        %837 = vmatprep.subr.mxu0 0.0
        %838 = vmatpush1.xpose.msra.mxu0 0.0
        %839 = vmatprep.subr.mxu0 0.0
        %840 = vmatpush1.xpose.msra.mxu0 0.0
        %841 = vmatprep.subr.mxu0 0.0
        %842 = vmatpush1.xpose.msra.mxu0 0.0
        %843 = vmatprep.subr.mxu0 0.0
        %844 = vmatpush1.xpose.msra.mxu0 0.0
        %845 = vmatprep.subr.mxu0 0.0
        %846 = vmatpush1.xpose.msra.mxu0 0.0
        %847 = vmatprep.subr.mxu0 0.0
        %848 = vmatpush1.xpose.msra.mxu0 0.0
        %849 = vmatprep.subr.mxu0 0.0
        %850 = vmatpush1.xpose.msra.mxu0 0.0
        %851 = vmatprep.subr.mxu0 0.0
        %852 = vmatpush1.xpose.msra.mxu0 0.0
        %853 = vmatprep.subr.mxu0 0.0
        %854 = vmatpush1.xpose.msra.mxu0 0.0
        %855 = vmatprep.subr.mxu0 0.0
        %856 = vmatpush1.xpose.msra.mxu0 0.0
        %857 = vmatprep.subr.mxu0 0.0
        %858 = vmatpush1.xpose.msra.mxu0 0.0
        %859 = vmatprep.subr.mxu0 0.0
        %860 = vmatpush1.xpose.msra.mxu0 0.0
        %861 = vmatprep.subr.mxu0 0.0
        %862 = vmatpush1.xpose.msra.mxu0 0.0
        %863 = vmatprep.subr.mxu0 0.0
        %864 = vmatpush1.xpose.msra.mxu0 0.0
        %865 = vmatprep.subr.mxu0 0.0
        %866 = vmatpush1.xpose.msra.mxu0 0.0
        %867 = vmatprep.subr.mxu0 0.0
        %868 = vmatpush1.xpose.msra.mxu0 0.0
        %869 = vmatprep.subr.mxu0 0.0
        %870 = vmatpush1.xpose.msra.mxu0 0.0
        %871 = vmatprep.subr.mxu0 0.0
        %872 = vmatpush1.xpose.msra.mxu0 0.0
        %873 = vmatprep.subr.mxu0 0.0
        %874 = vmatpush1.xpose.msra.mxu0 0.0
        %875 = vmatprep.subr.mxu0 0.0
        %876 = vmatpush1.xpose.msra.mxu0 0.0
        %877 = vmatprep.subr.mxu0 0.0
        %878 = vmatpush1.xpose.msra.mxu0 0.0
        %879 = vmatprep.subr.mxu0 0.0
        %880 = vmatpush1.xpose.msra.mxu0 0.0
        %881 = vmatprep.subr.mxu0 0.0
        %882 = vmatpush1.xpose.msra.mxu0 0.0
        %883 = vmatprep.subr.mxu0 0.0
        %884 = vmatpush1.xpose.msra.mxu0 0.0
        %885 = vmatprep.subr.mxu0 0.0
        %886 = vmatpush1.xpose.msra.mxu0 0.0
        %887 = vmatprep.subr.mxu0 0.0
        %888 = vmatpush1.xpose.msra.mxu0 0.0
        %889 = vmatprep.subr.mxu0 0.0
        %890 = vmatpush1.xpose.msra.mxu0 0.0
        %891 = vmatprep.subr.mxu0 0.0
        %892 = vmatpush1.xpose.msra.mxu0 0.0
        %893 = vmatprep.mubr.f32.mxu0 0.0
        %894 = vmatmul.mubr.f32.gmra.mrb[0].mxu0 %v824
        %v895 = vpop.f32.mrb[0].mxu0
        %v896 = vadd.f32 %v821, %v895
        %v897 = vpop.f32.mrb[0].mxu0
        %898 = vdwg.mxu0
        %v899 = vsel %vm822, %v896, -inf
        %900 = vmax.xlane.f32.xlu0 %v899
        %v901 = vpop.xlane.xlu0 %900
        %v902 = vsub.f32 %v896, %v901
        %v903 = vmul.f32 %v902, 1.442695
        %v904 = vpow.pop %v903
        %v905 = vsel %vm822, %v904, 0.0
        %906 = vadd.xlane.f32.xlu0 %v905
        %v907 = vpop.xlane.xlu0 %906
        %v908 = vrcp.pop %v907
        %v909 = vmul.f32 %v907, %v908
        %v910 = vsub.f32 2.0, %v909
        %v911 = vmul.f32 %v908, %v910
        %v912 = vmul.f32 %v904, %v911
        %913 = vst.msk [vmem:[%s556] sm:$0xff] %vm822, %v912
        %v915 = vsel %vm822, %v912, 0
        %917 = vmatprep.subr.mxu0 0.0
        %918 = vmatpush1.msra.mxu0 %v820
        %919 = vmatprep.subr.mxu0 0.0
        %920 = vmatpush1.msra.mxu0 0.0
        %921 = vmatprep.subr.mxu0 0.0
        %922 = vmatpush1.msra.mxu0 0.0
        %923 = vmatprep.subr.mxu0 0.0
        %924 = vmatpush1.msra.mxu0 0.0
        %925 = vmatprep.subr.mxu0 0.0
        %926 = vmatpush1.msra.mxu0 0.0
        %927 = vmatprep.subr.mxu0 0.0
        %928 = vmatpush1.msra.mxu0 0.0
        %929 = vmatprep.subr.mxu0 0.0
        %930 = vmatpush1.msra.mxu0 0.0
        %931 = vmatprep.subr.mxu0 0.0
        %932 = vmatpush1.msra.mxu0 0.0
        %933 = vmatprep.subr.mxu0 0.0
        %934 = vmatpush1.msra.mxu0 0.0
        %935 = vmatprep.subr.mxu0 0.0
        %936 = vmatpush1.msra.mxu0 0.0
        %937 = vmatprep.subr.mxu0 0.0
        %938 = vmatpush1.msra.mxu0 0.0
        %939 = vmatprep.subr.mxu0 0.0
        %940 = vmatpush1.msra.mxu0 0.0
        %941 = vmatprep.subr.mxu0 0.0
        %942 = vmatpush1.msra.mxu0 0.0
        %943 = vmatprep.subr.mxu0 0.0
        %944 = vmatpush1.msra.mxu0 0.0
        %945 = vmatprep.subr.mxu0 0.0
        %946 = vmatpush1.msra.mxu0 0.0
        %947 = vmatprep.subr.mxu0 0.0
        %948 = vmatpush1.msra.mxu0 0.0
        %949 = vmatprep.subr.mxu0 0.0
        %950 = vmatpush1.msra.mxu0 0.0
        %951 = vmatprep.subr.mxu0 0.0
        %952 = vmatpush1.msra.mxu0 0.0
        %953 = vmatprep.subr.mxu0 0.0
        %954 = vmatpush1.msra.mxu0 0.0
        %955 = vmatprep.subr.mxu0 0.0
        %956 = vmatpush1.msra.mxu0 0.0
        %957 = vmatprep.subr.mxu0 0.0
        %958 = vmatpush1.msra.mxu0 0.0
        %959 = vmatprep.subr.mxu0 0.0
        %960 = vmatpush1.msra.mxu0 0.0
        %961 = vmatprep.subr.mxu0 0.0
        %962 = vmatpush1.msra.mxu0 0.0
        %963 = vmatprep.subr.mxu0 0.0
        %964 = vmatpush1.msra.mxu0 0.0
        %965 = vmatprep.subr.mxu0 0.0
        %966 = vmatpush1.msra.mxu0 0.0
        %967 = vmatprep.subr.mxu0 0.0
        %968 = vmatpush1.msra.mxu0 0.0
        %969 = vmatprep.subr.mxu0 0.0
        %970 = vmatpush1.msra.mxu0 0.0
        %971 = vmatprep.subr.mxu0 0.0
        %972 = vmatpush1.msra.mxu0 0.0
        %973 = vmatprep.subr.mxu0 0.0
        %974 = vmatpush1.msra.mxu0 0.0
        %975 = vmatprep.subr.mxu0 0.0
        %976 = vmatpush1.msra.mxu0 0.0
        %977 = vmatprep.subr.mxu0 0.0
        %978 = vmatpush1.msra.mxu0 0.0
        %979 = vmatprep.subr.mxu0 0.0
        %980 = vmatpush1.msra.mxu0 0.0
        %981 = vmatprep.mubr.f32.mxu0 0.0
        %982 = vmatmul.mubr.f32.gmra.mrb[0].mxu0 %v915
        %v983 = vpop.f32.mrb[0].mxu0
        %v984 = vadd.f32 0.0, %v983
        %v985 = vpop.f32.mrb[0].mxu0
        %986 = vdwg.mxu0
        %987 = vrot.lane.b32.xlu0 %v818, 120
        %v988 = vpop.permute.xlu0 %987
        %989 = vrot.lane.b32.xlu0 %v819, 120
        %v990 = vpop.permute.xlu0 %989
        %v991 = vsel %vm822, %v988, 0
        %v993 = vsel %vm822, %v990, 0
        %995 = vmatprep.subr.mxu0 0.0
        %996 = vmatpush1.xpose.msra.mxu0 %v993
        %997 = vmatprep.subr.mxu0 0.0
        %998 = vmatpush1.xpose.msra.mxu0 0.0
        %999 = vmatprep.subr.mxu0 0.0
        %1000 = vmatpush1.xpose.msra.mxu0 0.0
        %1001 = vmatprep.subr.mxu0 0.0
        %1002 = vmatpush1.xpose.msra.mxu0 0.0
        %1003 = vmatprep.subr.mxu0 0.0
        %1004 = vmatpush1.xpose.msra.mxu0 0.0
        %1005 = vmatprep.subr.mxu0 0.0
        %1006 = vmatpush1.xpose.msra.mxu0 0.0
        %1007 = vmatprep.subr.mxu0 0.0
        %1008 = vmatpush1.xpose.msra.mxu0 0.0
        %1009 = vmatprep.subr.mxu0 0.0
        %1010 = vmatpush1.xpose.msra.mxu0 0.0
        %1011 = vmatprep.subr.mxu0 0.0
        %1012 = vmatpush1.xpose.msra.mxu0 0.0
        %1013 = vmatprep.subr.mxu0 0.0
        %1014 = vmatpush1.xpose.msra.mxu0 0.0
        %1015 = vmatprep.subr.mxu0 0.0
        %1016 = vmatpush1.xpose.msra.mxu0 0.0
        %1017 = vmatprep.subr.mxu0 0.0
        %1018 = vmatpush1.xpose.msra.mxu0 0.0
        %1019 = vmatprep.subr.mxu0 0.0
        %1020 = vmatpush1.xpose.msra.mxu0 0.0
        %1021 = vmatprep.subr.mxu0 0.0
        %1022 = vmatpush1.xpose.msra.mxu0 0.0
        %1023 = vmatprep.subr.mxu0 0.0
        %1024 = vmatpush1.xpose.msra.mxu0 0.0
        %1025 = vmatprep.subr.mxu0 0.0
        %1026 = vmatpush1.xpose.msra.mxu0 0.0
        %1027 = vmatprep.subr.mxu0 0.0
        %1028 = vmatpush1.xpose.msra.mxu0 0.0
        %1029 = vmatprep.subr.mxu0 0.0
        %1030 = vmatpush1.xpose.msra.mxu0 0.0
        %1031 = vmatprep.subr.mxu0 0.0
        %1032 = vmatpush1.xpose.msra.mxu0 0.0
        %1033 = vmatprep.subr.mxu0 0.0
        %1034 = vmatpush1.xpose.msra.mxu0 0.0
        %1035 = vmatprep.subr.mxu0 0.0
        %1036 = vmatpush1.xpose.msra.mxu0 0.0
        %1037 = vmatprep.subr.mxu0 0.0
        %1038 = vmatpush1.xpose.msra.mxu0 0.0
        %1039 = vmatprep.subr.mxu0 0.0
        %1040 = vmatpush1.xpose.msra.mxu0 0.0
        %1041 = vmatprep.subr.mxu0 0.0
        %1042 = vmatpush1.xpose.msra.mxu0 0.0
        %1043 = vmatprep.subr.mxu0 0.0
        %1044 = vmatpush1.xpose.msra.mxu0 0.0
        %1045 = vmatprep.subr.mxu0 0.0
        %1046 = vmatpush1.xpose.msra.mxu0 0.0
        %1047 = vmatprep.subr.mxu0 0.0
        %1048 = vmatpush1.xpose.msra.mxu0 0.0
        %1049 = vmatprep.subr.mxu0 0.0
        %1050 = vmatpush1.xpose.msra.mxu0 0.0
        %1051 = vmatprep.subr.mxu0 0.0
        %1052 = vmatpush1.xpose.msra.mxu0 0.0
        %1053 = vmatprep.subr.mxu0 0.0
        %1054 = vmatpush1.xpose.msra.mxu0 0.0
        %1055 = vmatprep.subr.mxu0 0.0
        %1056 = vmatpush1.xpose.msra.mxu0 0.0
        %1057 = vmatprep.subr.mxu0 0.0
        %1058 = vmatpush1.xpose.msra.mxu0 0.0
        %1059 = vmatprep.mubr.f32.mxu0 0.0
        %1060 = vmatmul.mubr.f32.gmra.mrb[0].mxu0 %v991
        %v1061 = vpop.f32.mrb[0].mxu0
        %v1062 = vadd.f32 %v821, %v1061
        %v1063 = vpop.f32.mrb[0].mxu0
        %1064 = vdwg.mxu0
        %v1065 = vsel %vm822, %v1062, -inf
        %1066 = vmax.xlane.f32.xlu0 %v1065
        %v1067 = vpop.xlane.xlu0 %1066
        %v1068 = vsub.f32 %v1062, %v1067
        %v1069 = vmul.f32 %v1068, 1.442695
        %v1070 = vpow.pop %v1069
        %v1071 = vsel %vm822, %v1070, 0.0
        %1072 = vadd.xlane.f32.xlu0 %v1071
        %v1073 = vpop.xlane.xlu0 %1072
        %v1074 = vrcp.pop %v1073
        %v1075 = vmul.f32 %v1073, %v1074
        %v1076 = vsub.f32 2.0, %v1075
        %v1077 = vmul.f32 %v1074, %v1076
        %v1078 = vmul.f32 %v1070, %v1077
        %s1079 = scalar_lea.vmem %s556, 8 [#allocation22]
        %1080 = vst.msk [vmem:[%s1079] sm:$0xff] %vm822, %v1078
        %1082 = vrot.lane.b32.xlu0 %v820, 120
        %v1083 = vpop.permute.xlu0 %1082
        %v1086 = vsel %vm822, %v1078, 0
        %1088 = vmatprep.subr.mxu0 0.0
        %1089 = vmatpush1.msra.mxu0 %v1083
        %1090 = vmatprep.subr.mxu0 0.0
        %1091 = vmatpush1.msra.mxu0 0.0
        %1092 = vmatprep.subr.mxu0 0.0
        %1093 = vmatpush1.msra.mxu0 0.0
        %1094 = vmatprep.subr.mxu0 0.0
        %1095 = vmatpush1.msra.mxu0 0.0
        %1096 = vmatprep.subr.mxu0 0.0
        %1097 = vmatpush1.msra.mxu0 0.0
        %1098 = vmatprep.subr.mxu0 0.0
        %1099 = vmatpush1.msra.mxu0 0.0
        %1100 = vmatprep.subr.mxu0 0.0
        %1101 = vmatpush1.msra.mxu0 0.0
        %1102 = vmatprep.subr.mxu0 0.0
        %1103 = vmatpush1.msra.mxu0 0.0
        %1104 = vmatprep.subr.mxu0 0.0
        %1105 = vmatpush1.msra.mxu0 0.0
        %1106 = vmatprep.subr.mxu0 0.0
        %1107 = vmatpush1.msra.mxu0 0.0
        %1108 = vmatprep.subr.mxu0 0.0
        %1109 = vmatpush1.msra.mxu0 0.0
        %1110 = vmatprep.subr.mxu0 0.0
        %1111 = vmatpush1.msra.mxu0 0.0
        %1112 = vmatprep.subr.mxu0 0.0
        %1113 = vmatpush1.msra.mxu0 0.0
        %1114 = vmatprep.subr.mxu0 0.0
        %1115 = vmatpush1.msra.mxu0 0.0
        %1116 = vmatprep.subr.mxu0 0.0
        %1117 = vmatpush1.msra.mxu0 0.0
        %1118 = vmatprep.subr.mxu0 0.0
        %1119 = vmatpush1.msra.mxu0 0.0
        %1120 = vmatprep.subr.mxu0 0.0
        %1121 = vmatpush1.msra.mxu0 0.0
        %1122 = vmatprep.subr.mxu0 0.0
        %1123 = vmatpush1.msra.mxu0 0.0
        %1124 = vmatprep.subr.mxu0 0.0
        %1125 = vmatpush1.msra.mxu0 0.0
        %1126 = vmatprep.subr.mxu0 0.0
        %1127 = vmatpush1.msra.mxu0 0.0
        %1128 = vmatprep.subr.mxu0 0.0
        %1129 = vmatpush1.msra.mxu0 0.0
        %1130 = vmatprep.subr.mxu0 0.0
        %1131 = vmatpush1.msra.mxu0 0.0
        %1132 = vmatprep.subr.mxu0 0.0
        %1133 = vmatpush1.msra.mxu0 0.0
        %1134 = vmatprep.subr.mxu0 0.0
        %1135 = vmatpush1.msra.mxu0 0.0
        %1136 = vmatprep.subr.mxu0 0.0
        %1137 = vmatpush1.msra.mxu0 0.0
        %1138 = vmatprep.subr.mxu0 0.0
        %1139 = vmatpush1.msra.mxu0 0.0
        %1140 = vmatprep.subr.mxu0 0.0
        %1141 = vmatpush1.msra.mxu0 0.0
        %1142 = vmatprep.subr.mxu0 0.0
        %1143 = vmatpush1.msra.mxu0 0.0
        %1144 = vmatprep.subr.mxu0 0.0
        %1145 = vmatpush1.msra.mxu0 0.0
        %1146 = vmatprep.subr.mxu0 0.0
        %1147 = vmatpush1.msra.mxu0 0.0
        %1148 = vmatprep.subr.mxu0 0.0
        %1149 = vmatpush1.msra.mxu0 0.0
        %1150 = vmatprep.subr.mxu0 0.0
        %1151 = vmatpush1.msra.mxu0 0.0
        %1152 = vmatprep.mubr.f32.mxu0 0.0
        %1153 = vmatmul.mubr.f32.gmra.mrb[0].mxu0 %v1086
        %v1154 = vpop.f32.mrb[0].mxu0
        %v1155 = vadd.f32 0.0, %v1154
        %v1156 = vpop.f32.mrb[0].mxu0
        %1157 = vdwg.mxu0
        %1158 = vrot.lane.b32.xlu0 %v818, 112
        %v1159 = vpop.permute.xlu0 %1158
        %1160 = vrot.lane.b32.xlu0 %v819, 112
        %v1161 = vpop.permute.xlu0 %1160
        %v1162 = vsel %vm822, %v1159, 0
        %v1164 = vsel %vm822, %v1161, 0
        %1166 = vmatprep.subr.mxu0 0.0
        %1167 = vmatpush1.xpose.msra.mxu0 %v1164
        %1168 = vmatprep.subr.mxu0 0.0
        %1169 = vmatpush1.xpose.msra.mxu0 0.0
        %1170 = vmatprep.subr.mxu0 0.0
        %1171 = vmatpush1.xpose.msra.mxu0 0.0
        %1172 = vmatprep.subr.mxu0 0.0
        %1173 = vmatpush1.xpose.msra.mxu0 0.0
        %1174 = vmatprep.subr.mxu0 0.0
        %1175 = vmatpush1.xpose.msra.mxu0 0.0
        %1176 = vmatprep.subr.mxu0 0.0
        %1177 = vmatpush1.xpose.msra.mxu0 0.0
        %1178 = vmatprep.subr.mxu0 0.0
        %1179 = vmatpush1.xpose.msra.mxu0 0.0
        %1180 = vmatprep.subr.mxu0 0.0
        %1181 = vmatpush1.xpose.msra.mxu0 0.0
        %1182 = vmatprep.subr.mxu0 0.0
        %1183 = vmatpush1.xpose.msra.mxu0 0.0
        %1184 = vmatprep.subr.mxu0 0.0
        %1185 = vmatpush1.xpose.msra.mxu0 0.0
        %1186 = vmatprep.subr.mxu0 0.0
        %1187 = vmatpush1.xpose.msra.mxu0 0.0
        %1188 = vmatprep.subr.mxu0 0.0
        %1189 = vmatpush1.xpose.msra.mxu0 0.0
        %1190 = vmatprep.subr.mxu0 0.0
        %1191 = vmatpush1.xpose.msra.mxu0 0.0
        %1192 = vmatprep.subr.mxu0 0.0
        %1193 = vmatpush1.xpose.msra.mxu0 0.0
        %1194 = vmatprep.subr.mxu0 0.0
        %1195 = vmatpush1.xpose.msra.mxu0 0.0
        %1196 = vmatprep.subr.mxu0 0.0
        %1197 = vmatpush1.xpose.msra.mxu0 0.0
        %1198 = vmatprep.subr.mxu0 0.0
        %1199 = vmatpush1.xpose.msra.mxu0 0.0
        %1200 = vmatprep.subr.mxu0 0.0
        %1201 = vmatpush1.xpose.msra.mxu0 0.0
        %1202 = vmatprep.subr.mxu0 0.0
        %1203 = vmatpush1.xpose.msra.mxu0 0.0
        %1204 = vmatprep.subr.mxu0 0.0
        %1205 = vmatpush1.xpose.msra.mxu0 0.0
        %1206 = vmatprep.subr.mxu0 0.0
        %1207 = vmatpush1.xpose.msra.mxu0 0.0
        %1208 = vmatprep.subr.mxu0 0.0
        %1209 = vmatpush1.xpose.msra.mxu0 0.0
        %1210 = vmatprep.subr.mxu0 0.0
        %1211 = vmatpush1.xpose.msra.mxu0 0.0
        %1212 = vmatprep.subr.mxu0 0.0
        %1213 = vmatpush1.xpose.msra.mxu0 0.0
        %1214 = vmatprep.subr.mxu0 0.0
        %1215 = vmatpush1.xpose.msra.mxu0 0.0
        %1216 = vmatprep.subr.mxu0 0.0
        %1217 = vmatpush1.xpose.msra.mxu0 0.0
        %1218 = vmatprep.subr.mxu0 0.0
        %1219 = vmatpush1.xpose.msra.mxu0 0.0
        %1220 = vmatprep.subr.mxu0 0.0
        %1221 = vmatpush1.xpose.msra.mxu0 0.0
        %1222 = vmatprep.subr.mxu0 0.0
        %1223 = vmatpush1.xpose.msra.mxu0 0.0
        %1224 = vmatprep.subr.mxu0 0.0
        %1225 = vmatpush1.xpose.msra.mxu0 0.0
        %1226 = vmatprep.subr.mxu0 0.0
        %1227 = vmatpush1.xpose.msra.mxu0 0.0
        %1228 = vmatprep.subr.mxu0 0.0
        %1229 = vmatpush1.xpose.msra.mxu0 0.0
        %1230 = vmatprep.mubr.f32.mxu0 0.0
        %1231 = vmatmul.mubr.f32.gmra.mrb[0].mxu0 %v1162
        %v1232 = vpop.f32.mrb[0].mxu0
        %v1233 = vadd.f32 %v821, %v1232
        %v1234 = vpop.f32.mrb[0].mxu0
        %1235 = vdwg.mxu0
        %v1236 = vsel %vm822, %v1233, -inf
        %1237 = vmax.xlane.f32.xlu0 %v1236
        %v1238 = vpop.xlane.xlu0 %1237
        %v1239 = vsub.f32 %v1233, %v1238
        %v1240 = vmul.f32 %v1239, 1.442695
        %v1241 = vpow.pop %v1240
        %v1242 = vsel %vm822, %v1241, 0.0
        %1243 = vadd.xlane.f32.xlu0 %v1242
        %v1244 = vpop.xlane.xlu0 %1243
        %v1245 = vrcp.pop %v1244
        %v1246 = vmul.f32 %v1244, %v1245
        %v1247 = vsub.f32 2.0, %v1246
        %v1248 = vmul.f32 %v1245, %v1247
        %v1249 = vmul.f32 %v1241, %v1248
        %s1250 = scalar_lea.vmem %s556, 16 [#allocation22]
        %1251 = vst.msk [vmem:[%s1250] sm:$0xff] %vm822, %v1249
        %1252 = vrot.lane.b32.xlu0 %v820, 112
        %v1253 = vpop.permute.xlu0 %1252
        %v1256 = vsel %vm822, %v1249, 0
        %1258 = vmatprep.subr.mxu0 0.0
        %1259 = vmatpush1.msra.mxu0 %v1253
        %1260 = vmatprep.subr.mxu0 0.0
        %1261 = vmatpush1.msra.mxu0 0.0
        %1262 = vmatprep.subr.mxu0 0.0
        %1263 = vmatpush1.msra.mxu0 0.0
        %1264 = vmatprep.subr.mxu0 0.0
        %1265 = vmatpush1.msra.mxu0 0.0
        %1266 = vmatprep.subr.mxu0 0.0
        %1267 = vmatpush1.msra.mxu0 0.0
        %1268 = vmatprep.subr.mxu0 0.0
        %1269 = vmatpush1.msra.mxu0 0.0
        %1270 = vmatprep.subr.mxu0 0.0
        %1271 = vmatpush1.msra.mxu0 0.0
        %1272 = vmatprep.subr.mxu0 0.0
        %1273 = vmatpush1.msra.mxu0 0.0
        %1274 = vmatprep.subr.mxu0 0.0
        %1275 = vmatpush1.msra.mxu0 0.0
        %1276 = vmatprep.subr.mxu0 0.0
        %1277 = vmatpush1.msra.mxu0 0.0
        %1278 = vmatprep.subr.mxu0 0.0
        %1279 = vmatpush1.msra.mxu0 0.0
        %1280 = vmatprep.subr.mxu0 0.0
        %1281 = vmatpush1.msra.mxu0 0.0
        %1282 = vmatprep.subr.mxu0 0.0
        %1283 = vmatpush1.msra.mxu0 0.0
        %1284 = vmatprep.subr.mxu0 0.0
        %1285 = vmatpush1.msra.mxu0 0.0
        %1286 = vmatprep.subr.mxu0 0.0
        %1287 = vmatpush1.msra.mxu0 0.0
        %1288 = vmatprep.subr.mxu0 0.0
        %1289 = vmatpush1.msra.mxu0 0.0
        %1290 = vmatprep.subr.mxu0 0.0
        %1291 = vmatpush1.msra.mxu0 0.0
        %1292 = vmatprep.subr.mxu0 0.0
        %1293 = vmatpush1.msra.mxu0 0.0
        %1294 = vmatprep.subr.mxu0 0.0
        %1295 = vmatpush1.msra.mxu0 0.0
        %1296 = vmatprep.subr.mxu0 0.0
        %1297 = vmatpush1.msra.mxu0 0.0
        %1298 = vmatprep.subr.mxu0 0.0
        %1299 = vmatpush1.msra.mxu0 0.0
        %1300 = vmatprep.subr.mxu0 0.0
        %1301 = vmatpush1.msra.mxu0 0.0
        %1302 = vmatprep.subr.mxu0 0.0
        %1303 = vmatpush1.msra.mxu0 0.0
        %1304 = vmatprep.subr.mxu0 0.0
        %1305 = vmatpush1.msra.mxu0 0.0
        %1306 = vmatprep.subr.mxu0 0.0
        %1307 = vmatpush1.msra.mxu0 0.0
        %1308 = vmatprep.subr.mxu0 0.0
        %1309 = vmatpush1.msra.mxu0 0.0
        %1310 = vmatprep.subr.mxu0 0.0
        %1311 = vmatpush1.msra.mxu0 0.0
        %1312 = vmatprep.subr.mxu0 0.0
        %1313 = vmatpush1.msra.mxu0 0.0
        %1314 = vmatprep.subr.mxu0 0.0
        %1315 = vmatpush1.msra.mxu0 0.0
        %1316 = vmatprep.subr.mxu0 0.0
        %1317 = vmatpush1.msra.mxu0 0.0
        %1318 = vmatprep.subr.mxu0 0.0
        %1319 = vmatpush1.msra.mxu0 0.0
        %1320 = vmatprep.subr.mxu0 0.0
        %1321 = vmatpush1.msra.mxu0 0.0
        %1322 = vmatprep.mubr.f32.mxu0 0.0
        %1323 = vmatmul.mubr.f32.gmra.mrb[0].mxu0 %v1256
        %v1324 = vpop.f32.mrb[0].mxu0
        %v1325 = vadd.f32 0.0, %v1324
        %v1326 = vpop.f32.mrb[0].mxu0
        %1327 = vdwg.mxu0
        %1328 = vrot.lane.b32.xlu0 %v818, 104
        %v1329 = vpop.permute.xlu0 %1328
        %1330 = vrot.lane.b32.xlu0 %v819, 104
        %v1331 = vpop.permute.xlu0 %1330
        %v1332 = vsel %vm822, %v1329, 0
        %v1334 = vsel %vm822, %v1331, 0
        %1336 = vmatprep.subr.mxu0 0.0
        %1337 = vmatpush1.xpose.msra.mxu0 %v1334
        %1338 = vmatprep.subr.mxu0 0.0
        %1339 = vmatpush1.xpose.msra.mxu0 0.0
        %1340 = vmatprep.subr.mxu0 0.0
        %1341 = vmatpush1.xpose.msra.mxu0 0.0
        %1342 = vmatprep.subr.mxu0 0.0
        %1343 = vmatpush1.xpose.msra.mxu0 0.0
        %1344 = vmatprep.subr.mxu0 0.0
        %1345 = vmatpush1.xpose.msra.mxu0 0.0
        %1346 = vmatprep.subr.mxu0 0.0
        %1347 = vmatpush1.xpose.msra.mxu0 0.0
        %1348 = vmatprep.subr.mxu0 0.0
        %1349 = vmatpush1.xpose.msra.mxu0 0.0
        %1350 = vmatprep.subr.mxu0 0.0
        %1351 = vmatpush1.xpose.msra.mxu0 0.0
        %1352 = vmatprep.subr.mxu0 0.0
        %1353 = vmatpush1.xpose.msra.mxu0 0.0
        %1354 = vmatprep.subr.mxu0 0.0
        %1355 = vmatpush1.xpose.msra.mxu0 0.0
        %1356 = vmatprep.subr.mxu0 0.0
        %1357 = vmatpush1.xpose.msra.mxu0 0.0
        %1358 = vmatprep.subr.mxu0 0.0
        %1359 = vmatpush1.xpose.msra.mxu0 0.0
        %1360 = vmatprep.subr.mxu0 0.0
        %1361 = vmatpush1.xpose.msra.mxu0 0.0
        %1362 = vmatprep.subr.mxu0 0.0
        %1363 = vmatpush1.xpose.msra.mxu0 0.0
        %1364 = vmatprep.subr.mxu0 0.0
        %1365 = vmatpush1.xpose.msra.mxu0 0.0
        %1366 = vmatprep.subr.mxu0 0.0
        %1367 = vmatpush1.xpose.msra.mxu0 0.0
        %1368 = vmatprep.subr.mxu0 0.0
        %1369 = vmatpush1.xpose.msra.mxu0 0.0
        %1370 = vmatprep.subr.mxu0 0.0
        %1371 = vmatpush1.xpose.msra.mxu0 0.0
        %1372 = vmatprep.subr.mxu0 0.0
        %1373 = vmatpush1.xpose.msra.mxu0 0.0
        %1374 = vmatprep.subr.mxu0 0.0
        %1375 = vmatpush1.xpose.msra.mxu0 0.0
        %1376 = vmatprep.subr.mxu0 0.0
        %1377 = vmatpush1.xpose.msra.mxu0 0.0
        %1378 = vmatprep.subr.mxu0 0.0
        %1379 = vmatpush1.xpose.msra.mxu0 0.0
        %1380 = vmatprep.subr.mxu0 0.0
        %1381 = vmatpush1.xpose.msra.mxu0 0.0
        %1382 = vmatprep.subr.mxu0 0.0
        %1383 = vmatpush1.xpose.msra.mxu0 0.0
        %1384 = vmatprep.subr.mxu0 0.0
        %1385 = vmatpush1.xpose.msra.mxu0 0.0
        %1386 = vmatprep.subr.mxu0 0.0
        %1387 = vmatpush1.xpose.msra.mxu0 0.0
        %1388 = vmatprep.subr.mxu0 0.0
        %1389 = vmatpush1.xpose.msra.mxu0 0.0
        %1390 = vmatprep.subr.mxu0 0.0
        %1391 = vmatpush1.xpose.msra.mxu0 0.0
        %1392 = vmatprep.subr.mxu0 0.0
        %1393 = vmatpush1.xpose.msra.mxu0 0.0
        %1394 = vmatprep.subr.mxu0 0.0
        %1395 = vmatpush1.xpose.msra.mxu0 0.0
        %1396 = vmatprep.subr.mxu0 0.0
        %1397 = vmatpush1.xpose.msra.mxu0 0.0
        %1398 = vmatprep.subr.mxu0 0.0
        %1399 = vmatpush1.xpose.msra.mxu0 0.0
        %1400 = vmatprep.mubr.f32.mxu0 0.0
        %1401 = vmatmul.mubr.f32.gmra.mrb[0].mxu0 %v1332
        %v1402 = vpop.f32.mrb[0].mxu0
        %v1403 = vadd.f32 %v821, %v1402
        %v1404 = vpop.f32.mrb[0].mxu0
        %1405 = vdwg.mxu0
        %v1406 = vsel %vm822, %v1403, -inf
        %1407 = vmax.xlane.f32.xlu0 %v1406
        %v1408 = vpop.xlane.xlu0 %1407
        %v1409 = vsub.f32 %v1403, %v1408
        %v1410 = vmul.f32 %v1409, 1.442695
        %v1411 = vpow.pop %v1410
        %v1412 = vsel %vm822, %v1411, 0.0
        %1413 = vadd.xlane.f32.xlu0 %v1412
        %v1414 = vpop.xlane.xlu0 %1413
        %v1415 = vrcp.pop %v1414
        %v1416 = vmul.f32 %v1414, %v1415
        %v1417 = vsub.f32 2.0, %v1416
        %v1418 = vmul.f32 %v1415, %v1417
        %v1419 = vmul.f32 %v1411, %v1418
        %s1420 = scalar_lea.vmem %s556, 24 [#allocation22]
        %1421 = vst.msk [vmem:[%s1420] sm:$0xff] %vm822, %v1419
        %1422 = vrot.lane.b32.xlu0 %v820, 104
        %v1423 = vpop.permute.xlu0 %1422
        %v1426 = vsel %vm822, %v1419, 0
        %1428 = vmatprep.subr.mxu0 0.0
        %1429 = vmatpush1.msra.mxu0 %v1423
        %1430 = vmatprep.subr.mxu0 0.0
        %1431 = vmatpush1.msra.mxu0 0.0
        %1432 = vmatprep.subr.mxu0 0.0
        %1433 = vmatpush1.msra.mxu0 0.0
        %1434 = vmatprep.subr.mxu0 0.0
        %1435 = vmatpush1.msra.mxu0 0.0
        %1436 = vmatprep.subr.mxu0 0.0
        %1437 = vmatpush1.msra.mxu0 0.0
        %1438 = vmatprep.subr.mxu0 0.0
        %1439 = vmatpush1.msra.mxu0 0.0
        %1440 = vmatprep.subr.mxu0 0.0
        %1441 = vmatpush1.msra.mxu0 0.0
        %1442 = vmatprep.subr.mxu0 0.0
        %1443 = vmatpush1.msra.mxu0 0.0
        %1444 = vmatprep.subr.mxu0 0.0
        %1445 = vmatpush1.msra.mxu0 0.0
        %1446 = vmatprep.subr.mxu0 0.0
        %1447 = vmatpush1.msra.mxu0 0.0
        %1448 = vmatprep.subr.mxu0 0.0
        %1449 = vmatpush1.msra.mxu0 0.0
        %1450 = vmatprep.subr.mxu0 0.0
        %1451 = vmatpush1.msra.mxu0 0.0
        %1452 = vmatprep.subr.mxu0 0.0
        %1453 = vmatpush1.msra.mxu0 0.0
        %1454 = vmatprep.subr.mxu0 0.0
        %1455 = vmatpush1.msra.mxu0 0.0
        %1456 = vmatprep.subr.mxu0 0.0
        %1457 = vmatpush1.msra.mxu0 0.0
        %1458 = vmatprep.subr.mxu0 0.0
        %1459 = vmatpush1.msra.mxu0 0.0
        %1460 = vmatprep.subr.mxu0 0.0
        %1461 = vmatpush1.msra.mxu0 0.0
        %1462 = vmatprep.subr.mxu0 0.0
        %1463 = vmatpush1.msra.mxu0 0.0
        %1464 = vmatprep.subr.mxu0 0.0
        %1465 = vmatpush1.msra.mxu0 0.0
        %1466 = vmatprep.subr.mxu0 0.0
        %1467 = vmatpush1.msra.mxu0 0.0
        %1468 = vmatprep.subr.mxu0 0.0
        %1469 = vmatpush1.msra.mxu0 0.0
        %1470 = vmatprep.subr.mxu0 0.0
        %1471 = vmatpush1.msra.mxu0 0.0
        %1472 = vmatprep.subr.mxu0 0.0
        %1473 = vmatpush1.msra.mxu0 0.0
        %1474 = vmatprep.subr.mxu0 0.0
        %1475 = vmatpush1.msra.mxu0 0.0
        %1476 = vmatprep.subr.mxu0 0.0
        %1477 = vmatpush1.msra.mxu0 0.0
        %1478 = vmatprep.subr.mxu0 0.0
        %1479 = vmatpush1.msra.mxu0 0.0
        %1480 = vmatprep.subr.mxu0 0.0
        %1481 = vmatpush1.msra.mxu0 0.0
        %1482 = vmatprep.subr.mxu0 0.0
        %1483 = vmatpush1.msra.mxu0 0.0
        %1484 = vmatprep.subr.mxu0 0.0
        %1485 = vmatpush1.msra.mxu0 0.0
        %1486 = vmatprep.subr.mxu0 0.0
        %1487 = vmatpush1.msra.mxu0 0.0
        %1488 = vmatprep.subr.mxu0 0.0
        %1489 = vmatpush1.msra.mxu0 0.0
        %1490 = vmatprep.subr.mxu0 0.0
        %1491 = vmatpush1.msra.mxu0 0.0
        %1492 = vmatprep.mubr.f32.mxu0 0.0
        %1493 = vmatmul.mubr.f32.gmra.mrb[0].mxu0 %v1426
        %v1494 = vpop.f32.mrb[0].mxu0
        %v1495 = vadd.f32 0.0, %v1494
        %v1496 = vpop.f32.mrb[0].mxu0
        %1497 = vdwg.mxu0
        %1499 = vrot.lane.b32.xlu0 %v1155, 8
        %v1500 = vpop.permute.xlu0 %1499
        %1503 = vrot.lane.b32.xlu0 %v1325, 16
        %v1504 = vpop.permute.xlu0 %1503
        %1507 = vrot.lane.b32.xlu0 %v1495, 24
        %v1508 = vpop.permute.xlu0 %1507
        %v1510 = vsel %vm822, %v984, %v1500
        %vm1511 = vcmask 130048
        %v1512 = vsel %vm1511, %v1510, %v1504
        %vm1513 = vcmask 195584
        %v1514 = vsel %vm1513, %v1512, %v1508
        %v1515 = vld [vmem:[#allocation16] sm:$0xff]
        %v1516 = vld [vmem:[#allocation16 + $0x8] sm:$0xff]
        %v1517 = vld [vmem:[#allocation16 + $0x10] sm:$0xff]
        %v1518 = vld [vmem:[#allocation16 + $0x18] sm:$0xff]
        %v1519 = vld [vmem:[#allocation18] sm:$0x1]
        %v1521 = vlaneseq
        %v1522 = vshrl.u32 %v1521, 7
        %v1523 = vsub.s32 0, %v1522
        %v1524 = vrot.slane %v1519, %v1523
        %v1527 = vsel %vm744, %v1514, 0
        %1529 = vmatprep.subr.mxu0 0.0
        %1530 = vmatpush1.msra.mxu0 %v1515
        %1531 = vmatprep.subr.mxu0 0.0
        %1532 = vmatpush1.msra.mxu0 %v1516
        %1533 = vmatprep.subr.mxu0 0.0
        %1534 = vmatpush1.msra.mxu0 %v1517
        %1535 = vmatprep.subr.mxu0 0.0
        %1536 = vmatpush1.msra.mxu0 %v1518
        %1537 = vmatprep.subr.mxu0 0.0
        %1538 = vmatpush1.msra.mxu0 0.0
        %1539 = vmatprep.subr.mxu0 0.0
        %1540 = vmatpush1.msra.mxu0 0.0
        %1541 = vmatprep.subr.mxu0 0.0
        %1542 = vmatpush1.msra.mxu0 0.0
        %1543 = vmatprep.subr.mxu0 0.0
        %1544 = vmatpush1.msra.mxu0 0.0
        %1545 = vmatprep.subr.mxu0 0.0
        %1546 = vmatpush1.msra.mxu0 0.0
        %1547 = vmatprep.subr.mxu0 0.0
        %1548 = vmatpush1.msra.mxu0 0.0
        %1549 = vmatprep.subr.mxu0 0.0
        %1550 = vmatpush1.msra.mxu0 0.0
        %1551 = vmatprep.subr.mxu0 0.0
        %1552 = vmatpush1.msra.mxu0 0.0
        %1553 = vmatprep.subr.mxu0 0.0
        %1554 = vmatpush1.msra.mxu0 0.0
        %1555 = vmatprep.subr.mxu0 0.0
        %1556 = vmatpush1.msra.mxu0 0.0
        %1557 = vmatprep.subr.mxu0 0.0
        %1558 = vmatpush1.msra.mxu0 0.0
        %1559 = vmatprep.subr.mxu0 0.0
        %1560 = vmatpush1.msra.mxu0 0.0
        %1561 = vmatprep.subr.mxu0 0.0
        %1562 = vmatpush1.msra.mxu0 0.0
        %1563 = vmatprep.subr.mxu0 0.0
        %1564 = vmatpush1.msra.mxu0 0.0
        %1565 = vmatprep.subr.mxu0 0.0
        %1566 = vmatpush1.msra.mxu0 0.0
        %1567 = vmatprep.subr.mxu0 0.0
        %1568 = vmatpush1.msra.mxu0 0.0
        %1569 = vmatprep.subr.mxu0 0.0
        %1570 = vmatpush1.msra.mxu0 0.0
        %1571 = vmatprep.subr.mxu0 0.0
        %1572 = vmatpush1.msra.mxu0 0.0
        %1573 = vmatprep.subr.mxu0 0.0
        %1574 = vmatpush1.msra.mxu0 0.0
        %1575 = vmatprep.subr.mxu0 0.0
        %1576 = vmatpush1.msra.mxu0 0.0
        %1577 = vmatprep.subr.mxu0 0.0
        %1578 = vmatpush1.msra.mxu0 0.0
        %1579 = vmatprep.subr.mxu0 0.0
        %1580 = vmatpush1.msra.mxu0 0.0
        %1581 = vmatprep.subr.mxu0 0.0
        %1582 = vmatpush1.msra.mxu0 0.0
        %1583 = vmatprep.subr.mxu0 0.0
        %1584 = vmatpush1.msra.mxu0 0.0
        %1585 = vmatprep.subr.mxu0 0.0
        %1586 = vmatpush1.msra.mxu0 0.0
        %1587 = vmatprep.subr.mxu0 0.0
        %1588 = vmatpush1.msra.mxu0 0.0
        %1589 = vmatprep.subr.mxu0 0.0
        %1590 = vmatpush1.msra.mxu0 0.0
        %1591 = vmatprep.subr.mxu0 0.0
        %1592 = vmatpush1.msra.mxu0 0.0
        %1593 = vmatprep.mubr.f32.mxu0 0.0
        %1594 = vmatmul.mubr.f32.gmra.mrb[0].mxu0 %v1527
        %v1595 = vpop.f32.mrb[0].mxu0
        %v1596 = vadd.f32 %v1524, %v1595
        %v1597 = vpop.f32.mrb[0].mxu0
        %1598 = vdwg.mxu0
        %1599 = vst.msk [vmem:[%s549] sm:$0xff] %vm744, %v1596
        %s1600 = sand.u32 %s279, 1
        %s1601 = scalar_lea.sflag [#allocation6], %s1600
        %s1602 = sand.u32 %s279, 1
        %s1603 = smul.addr %s1602, 8
        %s1604 = scalar_lea.vmem [#allocation21], %s1603
        %s1605 = sand.u32 %s307, 1
        %s1606 = scalar_lea.sflag [#allocation23], %s1605
        %s1607 = sand.u32 %s307, 1
        %s1608 = smul.addr %s1607, 32
        %s1609 = scalar_lea.vmem [#allocation22], %s1608
        // Predicated region
        $region105: #{tpu_custom_call.1} parent=59 // pred_check
          %p1610 = pneg %p289
        $region106: #{tpu_custom_call.1} parent=59 // pred_check_branch
          %1612 = sbr.rel (%p1610) target = $region108
        $region107: #{tpu_custom_call.1} parent=59 // pred_region
          %s1614 = ssub.s32 128, 128
          %1615 = vsyncadd %s1601, %s1614
          %s1616 = sadd.s32 %s42, %s41
          %s1617 = smul.addr %s1616, 128
          %s1618 = scalar_lea.hbm %s10, %s1617
          %s1620 = sshll.u32 %s1604, 4
          %s1621 = int_to_ptr.vmem [resolvable:$true] %s1620
          %1623 = dma.vmem_to_hbm [thread:$0]  %s1621, 128, %s1618, %s1601
        $region108: #{tpu_custom_call.1} parent=59 // pred_fallthru
          _
        // Predicated region
        $region109: #{tpu_custom_call.1} parent=59 // pred_check
          %p1624 = pneg %p317
        $region110: #{tpu_custom_call.1} parent=59 // pred_check_branch
          %1626 = sbr.rel (%p1624) target = $region112
        $region111: #{tpu_custom_call.1} parent=59 // pred_region
          %s1628 = ssub.s32 512, 512
          %1629 = vsyncadd %s1606, %s1628
          %s1630 = smul.addr %s41, 4
          %s1631 = sadd.s32 %s42, %s1630
          %s1632 = smul.addr %s1631, 128
          %s1633 = scalar_lea.hbm %s11, %s1632
          %s1634 = sshll.u32 %s1609, 4
          %s1635 = int_to_ptr.vmem [resolvable:$true] %s1634
          %1640 = dma.vmem_to_hbm [thread:$0]  %s1635, 512, %s1633, %s1606, 128, 128, 8
        $region112: #{tpu_custom_call.1} parent=59 // pred_fallthru
          _
      $region60: #{tpu_custom_call.1} parent=5 // pred_fallthru
        _
      %p1641 = scmp.le.s32.totalorder 2, %s32
      // Predicated region
      $region113: #{tpu_custom_call.1} parent=5 // pred_check
        %p1642 = pneg %p1641
      $region114: #{tpu_custom_call.1} parent=5 // pred_check_branch
        %1644 = sbr.rel (%p1642) target = $region116
      $region115: #{tpu_custom_call.1} parent=5 // pred_region
        %s1645 = ssub.s32 %s32, 2
        // Predicated region
        $region117: #{tpu_custom_call.1} parent=115 // pred_check
          %p1646 = pneg %p295
        $region118: #{tpu_custom_call.1} parent=115 // pred_check_branch
          %1648 = sbr.rel (%p1646) target = $region120
        $region119: #{tpu_custom_call.1} parent=115 // pred_region
          %s1649 = sand.u32 %s280, 1
          %s1650 = scalar_lea.sflag [#allocation6], %s1649
          %s1651 = sand.u32 %s280, 1
          %s1652 = smul.addr %s1651, 8
          %s1653 = scalar_lea.vmem [#allocation21], %s1652
          %1654 = dma.done %s1650, 128
        $region120: #{tpu_custom_call.1} parent=115 // pred_fallthru
          _
        // Predicated region
        $region121: #{tpu_custom_call.1} parent=115 // pred_check
          %p1655 = pneg %p323
        $region122: #{tpu_custom_call.1} parent=115 // pred_check_branch
          %1657 = sbr.rel (%p1655) target = $region124
        $region123: #{tpu_custom_call.1} parent=115 // pred_region
          %s1658 = sand.u32 %s308, 1
          %s1659 = scalar_lea.sflag [#allocation23], %s1658
          %s1660 = sand.u32 %s308, 1
          %s1661 = smul.addr %s1660, 32
          %s1662 = scalar_lea.vmem [#allocation22], %s1661
          %1663 = dma.done %s1659, 512
        $region124: #{tpu_custom_call.1} parent=115 // pred_fallthru
          _
      $region116: #{tpu_custom_call.1} parent=5 // pred_fallthru
        _
    $region6: #{tpu_custom_call.1} parent=1 // loop_footer
      %s36 = sadd.s32 1, %s32
    $region7: #{tpu_custom_call.1} parent=1 // loop_footer_branch
      %31 = sbr.rel target = $region3
    $region8: #{tpu_custom_call.1} parent=1 // loop_exit
      _
    %1664 = vsyncpa [#allocation5], 1
    %s1665 = scalar_lea.sflag [#allocation5], 1
    %1666 = vsyncpa %s1665, 1
    %1667 = vsyncpa [#allocation8], 1
    %1668 = vsyncpa [#allocation11], 1
    %1669 = vsyncpa [#allocation14], 1
    %1670 = vsyncpa [#allocation17], 1
    %1671 = vsyncpa [#allocation20], 1
    %1672 = vsyncpa [#allocation6], 1
    %s1673 = scalar_lea.sflag [#allocation6], 1
    %1674 = vsyncpa %s1673, 1
    %1675 = vsyncpa [#allocation23], 1
    %s1676 = scalar_lea.sflag [#allocation23], 1
    %1677 = vsyncpa %s1676, 1

</llo_original>
